<compile_context>
chip_gen: v7x
topology: tpu7x:2x2x1
jax: 0.10.0
libtpu: 0.0.40
codegen_flags: <defaults>
</compile_context>

<pallas_src>
import numpy as np
import jax
import jax.numpy as jnp
from jax.experimental import pallas as pl
from jax.experimental.pallas import tpu as pltpu

F32 = jnp.float32
BF16 = jnp.bfloat16


# ----------------------------------------------------------------------------
# small helpers
# ----------------------------------------------------------------------------
def _mosaic_params(dims):
    # TODO(synk): for v7x also set vmem_limit_bytes and single-buffer the
    # grid-invariant weight specs (pipeline_mode=pl.Buffered(1)) once the
    # production tile sizes approach the 64 MiB VMEM budget.
    return pltpu.CompilerParams(dimension_semantics=dims)


if hasattr(pl, "reciprocal"):
    def _recip(x):
        # approx=True uses the EUP slot; use approx=False for strict parity.
        return pl.reciprocal(x, approx=True)
else:  # very old jax fallback
    def _recip(x):
        return 1.0 / x


def _mxu(act, w):
    """bf16 MXU matmul with f32 accumulation."""
    return jnp.dot(act.astype(BF16), w, preferred_element_type=F32)


def _dot32(a, b):
    """tiny f32 matmul (head-selector expansions / score reductions)."""
    return jnp.dot(a, b, preferred_element_type=F32)


def _row_grid(n, max_tile=512):
    """Row tile (multiple of 16, bf16 sublane-aligned) and padded row count.

    When possible the grid has >= 2 steps so the 'parallel' axis can shard
    across both TensorCores on v7x."""
    n16 = ((max(n, 1) + 15) // 16) * 16
    tile = min(max_tile, n16)
    if tile == n16 and n16 >= 32:
        tile = ((n16 // 2 + 15) // 16) * 16
    padded = ((n16 + tile - 1) // tile) * tile
    return padded, tile


def _pad_axis(x, axis, target):
    pad = target - x.shape[axis]
    if pad == 0:
        return x
    widths = [(0, 0)] * x.ndim
    widths[axis] = (0, pad)
    return jnp.pad(x, widths)


def _weight_spec(arr):
    zeros = (0,) * arr.ndim
    return pl.BlockSpec(arr.shape, lambda i: zeros)


# ----------------------------------------------------------------------------
# Kernel 1: fused TimeEncode + message MLP + GRUCell memory update
#   (runs only over the unique touched nodes; GRU gate weights N-stacked)
# ----------------------------------------------------------------------------
def _msg_gru_kernel(h_ref, other_ref, edge_ref, delta_ref,
                    tw_ref, tb_ref,
                    w1s_ref, w1o_ref, w1e_ref, w1t_ref, b1_ref,
                    w2_ref, b2_ref,
                    wi_ref, bi_ref, wh_ref, bh_ref,
                    out_ref):
    h = h_ref[...]                                  # (T, M) f32 (GRU hidden)
    hb = h.astype(BF16)
    e = edge_ref[...]                               # (T, 1) f32
    d = delta_ref[...]                              # (T, 1) f32
    m = h.shape[1]

    # fused time encoding cos(dt * w + b)
    te = jnp.cos(d * tw_ref[...] + tb_ref[...])     # (T, D) f32

    # message MLP: concat folded into summed partial matmuls (hid zero-padded
    # to 256 lanes, so m1 is lane-dense and w2's K is a multiple of 128).
    m1 = (_mxu(hb, w1s_ref[...]) + _mxu(other_ref[...], w1o_ref[...])
          + e * w1e_ref[...] + _mxu(te, w1t_ref[...]) + b1_ref[...])
    m1 = jnp.maximum(m1, 0.0)
    msg = _mxu(m1, w2_ref[...]) + b2_ref[...]       # (T, msg_dim) f32

    # GRUCell with N-stacked gate weights [r|z|n]; slices at 128-lane steps.
    gi = _mxu(msg, wi_ref[...]) + bi_ref[...]       # (T, 3M)
    gh = _mxu(hb, wh_ref[...]) + bh_ref[...]        # (T, 3M)
    r = jax.nn.sigmoid(gi[:, :m] + gh[:, :m])
    z = jax.nn.sigmoid(gi[:, m:2 * m] + gh[:, m:2 * m])
    n = jnp.tanh(gi[:, 2 * m:] + r * gh[:, 2 * m:])
    out_ref[...] = (1.0 - z) * n + z * h


def message_gru_update(h_rows, other_rows, edge_rows, delta_rows, kp):
    u, mem_dim = h_rows.shape
    padded, tile = _row_grid(u)
    h_p = _pad_axis(h_rows, 0, padded)
    o_p = _pad_axis(other_rows.astype(BF16), 0, padded)
    e_p = _pad_axis(edge_rows, 0, padded)
    d_p = _pad_axis(delta_rows, 0, padded)

    weights = [kp["time_w"], kp["time_b"],
               kp["w1_self"], kp["w1_other"], kp["w1_edge"], kp["w1_time"],
               kp["b1"], kp["w2"], kp["b2"],
               kp["gru_wi"], kp["gru_bi"], kp["gru_wh"], kp["gru_bh"]]

    def row(feat):
        return pl.BlockSpec((tile, feat), lambda i: (i, 0))

    out = pl.pallas_call(
        _msg_gru_kernel,
        grid=(padded // tile,),
        in_specs=[row(mem_dim), row(mem_dim), row(1), row(1)]
                 + [_weight_spec(w) for w in weights],
        out_specs=pl.BlockSpec((tile, mem_dim), lambda i: (i, 0)),
        out_shape=jax.ShapeDtypeStruct((padded, mem_dim), F32),
        compiler_params=_mosaic_params(("parallel",)),
    )(h_p, o_p, e_p, d_p, *weights)
    return out[:u]


# ----------------------------------------------------------------------------
# Kernel 2: temporal multi-head graph attention (online softmax) + MergeLayer
#           + fused community predictor epilogue.
#   Neighbor tensors are neighbor-major (K, B, .) so each per-neighbor slab is
#   a static leading-axis index (no in-kernel reshape / concat).
# ----------------------------------------------------------------------------
def _make_attn_pred_kernel(n_ngh):
    def kernel(qfeat_ref, srcraw_ref, ngh_ref, edge_ref, delta_ref, mask_ref,
               comm_ref, use_ref,
               tw_ref, tb_ref,
               wqn_ref, qtb_ref,
               wkvn_ref, wkvt_ref, wkve_ref,
               hsel_ref, hselt_ref,
               wo_ref,
               f1a_ref, f1s_ref, f1b_ref, f2w_ref, f2b_ref,
               pw1_ref, pb1_ref, pwc1c_ref,
               pwn2_ref, pbn2_ref, pwc2_ref, pbc2_ref,
               emb_ref, pred_ref):
        qfeat = qfeat_ref[...]                      # (T, D) bf16
        tw = tw_ref[...]                            # (1, D) f32
        tb = tb_ref[...]                            # (1, D) f32
        hsel = hsel_ref[...]                        # (A, H) f32 (host constant)
        hselt = hselt_ref[...]                      # (H, A) f32
        wkvn = wkvn_ref[...]                        # (D, 2A) bf16
        wkvt = wkvt_ref[...]                        # (D, 2A) bf16
        wkve = wkve_ref[...]                        # (1, 2A) f32

        t_rows = qfeat.shape[0]
        a_dim = hsel.shape[0]
        n_heads = hsel.shape[1]

        # query: 1/sqrt(dk) and the dt=0 time-encoding term are folded into
        # wq / a precomputed bias on the host.
        q = jnp.dot(qfeat, wqn_ref[...], preferred_element_type=F32) + qtb_ref[...]

        # online (flash-style) softmax over neighbors: live set is just
        # m/l (T,H) and acc (T,A) per row tile.
        m_run = jnp.full((t_rows, n_heads), -1e30, F32)
        l_run = jnp.zeros((t_rows, n_heads), F32)
        acc = jnp.zeros((t_rows, a_dim), F32)
        for j in range(n_ngh):
            ngh_j = ngh_ref[j]                      # (T, D) bf16
            e_j = edge_ref[j]                       # (T, 1) f32
            d_j = delta_ref[j]                      # (T, 1) f32
            msk_j = mask_ref[j]                     # (T, 1) f32
            te_j = jnp.cos(d_j * tw + tb)           # (T, D) f32
            # N-stacked K|V projection: one (T,2A) matmul, free 128-lane slices
            kv_j = (jnp.dot(ngh_j, wkvn, preferred_element_type=F32)
                    + _mxu(te_j, wkvt) + e_j * wkve)
            k_j = kv_j[:, :a_dim]
            v_j = kv_j[:, a_dim:]
            s_j = _dot32(q * k_j, hsel)             # (T, H) per-head scores
            s_j = jnp.where(msk_j > 0.0, s_j, -1e9)
            m_new = jnp.maximum(m_run, s_j)
            alpha = jnp.exp(m_run - m_new)          # (T, H)
            p_j = jnp.exp(s_j - m_new)              # (T, H)
            acc = _dot32(alpha, hselt) * acc + _dot32(p_j, hselt) * v_j
            l_run = alpha * l_run + p_j
            m_run = m_new

        attn = acc * _recip(_dot32(l_run, hselt))   # (T, A)
        attn_o = _mxu(attn, wo_ref[...])            # (T, D)

        # MergeLayer([attn_out, src_raw]) with split weights
        h1 = jnp.maximum(_mxu(attn_o, f1a_ref[...])
                         + jnp.dot(srcraw_ref[...], f1s_ref[...],
                                   preferred_element_type=F32)
                         + f1b_ref[...], 0.0)
        emb = _mxu(h1, f2w_ref[...]) + f2b_ref[...]
        emb_ref[...] = emb

        # fused community predictor: node-MLP vs community-MLP blended by
        # use_index; scalar heads zero-padded to 128 lanes (col 0 = pred).
        d_feat = emb.shape[1]
        h12 = _mxu(emb, pw1_ref[...]) + pb1_ref[...]            # (T, 2D)
        hn = jnp.maximum(h12[:, :d_feat], 0.0)
        hc = jnp.maximum(h12[:, d_feat:]
                         + jnp.dot(comm_ref[...], pwc1c_ref[...],
                                   preferred_element_type=F32), 0.0)
        pn = _mxu(hn, pwn2_ref[...]) + pbn2_ref[...]            # (T, 128)
        pc = _mxu(hc, pwc2_ref[...]) + pbc2_ref[...]            # (T, 128)
        pred_ref[...] = jnp.where(use_ref[...] > 0.0, pc, pn)

    return kernel


def graph_attention_predict(qfeat, src_raw, ngh_feat, ngh_edge, ngh_delta,
                            ngh_mask, comm_emb, use_idx, kp):
    b_rows, d = qfeat.shape
    k = ngh_feat.shape[0]
    padded, tile = _row_grid(b_rows)

    qfeat_p = _pad_axis(qfeat, 0, padded)
    src_raw_p = _pad_axis(src_raw, 0, padded)
    ngh_feat_p = _pad_axis(ngh_feat, 1, padded)
    ngh_edge_p = _pad_axis(ngh_edge, 1, padded)
    ngh_delta_p = _pad_axis(ngh_delta, 1, padded)
    ngh_mask_p = _pad_axis(ngh_mask, 1, padded)
    comm_p = _pad_axis(comm_emb, 0, padded)
    use_p = _pad_axis(use_idx, 0, padded)

    weights = [kp["time_w"], kp["time_b"],
               kp["wq_n"], kp["q_tbias"],
               kp["wkv_n"], kp["wkv_t"], kp["wkv_e"],
               kp["hsel"], kp["hsel_t"],
               kp["wo"],
               kp["f1a"], kp["f1s"], kp["f1b"], kp["f2w"], kp["f2b"],
               kp["p_w1"], kp["p_b1"], kp["p_wc1c"],
               kp["p_wn2"], kp["p_bn2"], kp["p_wc2"], kp["p_bc2"]]

    def row2(feat):
        return pl.BlockSpec((tile, feat), lambda i: (i, 0))

    def row3(feat):
        return pl.BlockSpec((k, tile, feat), lambda i: (0, i, 0))

    emb, pred = pl.pallas_call(
        _make_attn_pred_kernel(k),
        grid=(padded // tile,),
        in_specs=[row2(d), row2(d), row3(d), row3(1), row3(1), row3(1),
                  row2(d), row2(1)]
                 + [_weight_spec(w) for w in weights],
        out_specs=[pl.BlockSpec((tile, d), lambda i: (i, 0)),
                   pl.BlockSpec((tile, 128), lambda i: (i, 0))],
        out_shape=(jax.ShapeDtypeStruct((padded, d), F32),
                   jax.ShapeDtypeStruct((padded, 128), F32)),
        compiler_params=_mosaic_params(("parallel",)),
    )(qfeat_p, src_raw_p, ngh_feat_p, ngh_edge_p, ngh_delta_p, ngh_mask_p,
      comm_p, use_p, *weights)
    return emb[:b_rows], pred[:b_rows]


# ----------------------------------------------------------------------------
# Parameter init (deterministic, synthetic; per-piece weights) and the
# host-side "prepare" step that stacks / pads / casts them for the kernels.
# ----------------------------------------------------------------------------
def init_params(key, d, mem_dim, msg_dim, hid, n_heads):
    a = d  # total attention dim = n_heads * (d // n_heads)
    names_shapes = [
        ("w1_self", (mem_dim, hid)), ("w1_other", (mem_dim, hid)),
        ("w1_edge", (1, hid)), ("w1_time", (d, hid)), ("b1", (1, hid)),
        ("w2", (hid, msg_dim)), ("b2", (1, msg_dim)),
        ("gru_wi_r", (msg_dim, mem_dim)), ("gru_wi_z", (msg_dim, mem_dim)),
        ("gru_wi_n", (msg_dim, mem_dim)),
        ("gru_bi_r", (1, mem_dim)), ("gru_bi_z", (1, mem_dim)),
        ("gru_bi_n", (1, mem_dim)),
        ("gru_wh_r", (mem_dim, mem_dim)), ("gru_wh_z", (mem_dim, mem_dim)),
        ("gru_wh_n", (mem_dim, mem_dim)),
        ("gru_bh_r", (1, mem_dim)), ("gru_bh_z", (1, mem_dim)),
        ("gru_bh_n", (1, mem_dim)),
        ("attn_wq_n", (d, a)), ("attn_wq_t", (d, a)),
        ("attn_wk_n", (d, a)), ("attn_wk_t", (d, a)), ("attn_wk_e", (1, a)),
        ("attn_wv_n", (d, a)), ("attn_wv_t", (d, a)), ("attn_wv_e", (1, a)),
        ("attn_wo", (a, d)),
        ("mrg_f1a", (d, d)), ("mrg_f1s", (d, d)), ("mrg_f1b", (1, d)),
        ("mrg_f2w", (d, d)), ("mrg_f2b", (1, d)),
        ("prd_wn1", (d, d)), ("prd_bn1", (1, d)),
        ("prd_wn2", (d, 1)), ("prd_bn2", (1, 1)),
        ("prd_wc1s", (d, d)), ("prd_wc1c", (d, d)), ("prd_bc1", (1, d)),
        ("prd_wc2", (d, 1)), ("prd_bc2", (1, 1)),
    ]
    keys = jax.random.split(key, len(names_shapes))
    p = {n: jax.random.normal(k, s, F32) * 0.1
         for (n, s), k in zip(names_shapes, keys)}
    # TGN TimeEncode deterministic init: w = 1/10^linspace(0,9,D), b = 0
    p["time_w"] = jnp.asarray(1.0 / 10.0 ** np.linspace(0, 9, d), F32).reshape(1, d)
    p["time_b"] = jnp.zeros((1, d), F32)
    return p


def prepare_params(p, n_heads):
    """Stack weights along the output axis, zero-pad odd dims, cast matmul
    weights to bf16, fold 1/sqrt(dk) + dt=0 time-encoding into the query."""
    d = p["time_w"].shape[1]
    a = p["attn_wq_n"].shape[1]
    hid = p["w1_self"].shape[1]
    dk = a // n_heads
    scale = 1.0 / float(np.sqrt(dk))
    hid_p = ((hid + 127) // 128) * 128

    def pad_cols(w, target):
        return jnp.pad(w, ((0, 0), (0, target - w.shape[1])))

    def pad_rows(w, target):
        return jnp.pad(w, ((0, target - w.shape[0]), (0, 0)))

    kp = {"time_w": p["time_w"], "time_b": p["time_b"]}

    # message MLP (hidden dim zero-padded so numerics are unchanged)
    kp["w1_self"] = pad_cols(p["w1_self"], hid_p).astype(BF16)
    kp["w1_other"] = pad_cols(p["w1_other"], hid_p).astype(BF16)
    kp["w1_edge"] = pad_cols(p["w1_edge"], hid_p)
    kp["w1_time"] = pad_cols(p["w1_time"], hid_p).astype(BF16)
    kp["b1"] = pad_cols(p["b1"], hid_p)
    kp["w2"] = pad_rows(p["w2"], hid_p).astype(BF16)
    kp["b2"] = p["b2"]

    # GRU gate weights N-stacked [r|z|n]
    kp["gru_wi"] = jnp.concatenate(
        [p["gru_wi_r"], p["gru_wi_z"], p["gru_wi_n"]], axis=1).astype(BF16)
    kp["gru_bi"] = jnp.concatenate(
        [p["gru_bi_r"], p["gru_bi_z"], p["gru_bi_n"]], axis=1)
    kp["gru_wh"] = jnp.concatenate(
        [p["gru_wh_r"], p["gru_wh_z"], p["gru_wh_n"]], axis=1).astype(BF16)
    kp["gru_bh"] = jnp.concatenate(
        [p["gru_bh_r"], p["gru_bh_z"], p["gru_bh_n"]], axis=1)

    # attention: scaled query, precomputed dt=0 time bias, stacked K|V weights
    kp["wq_n"] = (p["attn_wq_n"] * scale).astype(BF16)
    kp["q_tbias"] = jnp.dot(jnp.cos(p["time_b"]), p["attn_wq_t"]) * scale
    kp["wkv_n"] = jnp.concatenate([p["attn_wk_n"], p["attn_wv_n"]], axis=1).astype(BF16)
    kp["wkv_t"] = jnp.concatenate([p["attn_wk_t"], p["attn_wv_t"]], axis=1).astype(BF16)
    kp["wkv_e"] = jnp.concatenate([p["attn_wk_e"], p["attn_wv_e"]], axis=1)
    hsel = np.kron(np.eye(n_heads, dtype=np.float32),
                   np.ones((dk, 1), np.float32))                 # (A, H)
    kp["hsel"] = jnp.asarray(hsel)
    kp["hsel_t"] = jnp.asarray(np.ascontiguousarray(hsel.T))
    kp["wo"] = p["attn_wo"].astype(BF16)
    kp["f1a"] = p["mrg_f1a"].astype(BF16)
    kp["f1s"] = p["mrg_f1s"].astype(BF16)
    kp["f1b"] = p["mrg_f1b"]
    kp["f2w"] = p["mrg_f2w"].astype(BF16)
    kp["f2b"] = p["mrg_f2b"]

    # community predictor: first layers N-stacked, scalar heads padded to 128
    kp["p_w1"] = jnp.concatenate([p["prd_wn1"], p["prd_wc1s"]], axis=1).astype(BF16)
    kp["p_b1"] = jnp.concatenate([p["prd_bn1"], p["prd_bc1"]], axis=1)
    kp["p_wc1c"] = p["prd_wc1c"].astype(BF16)
    kp["p_wn2"] = pad_cols(p["prd_wn2"], 128).astype(BF16)
    kp["p_bn2"] = pad_cols(p["prd_bn2"], 128)
    kp["p_wc2"] = pad_cols(p["prd_wc2"], 128).astype(BF16)
    kp["p_bc2"] = pad_cols(p["prd_bc2"], 128)
    return kp


# ----------------------------------------------------------------------------
# Forward pass glue (mirrors CDGP.forward / compute_embeddings)
# ----------------------------------------------------------------------------
def cdgp_forward(kparams, state, source_nodes, destination_nodes, edge_times,
                 edge_idxs, index, n_neighbors=8):
    n_samples = len(source_nodes)
    memory = state["memory"]
    last_update = state["last_update"]
    node_raw = state["node_raw_features"]
    edge_raw = state["edge_raw_features"]
    n_nodes = memory.shape[0]

    nodes_np = np.concatenate([source_nodes, destination_nodes]).astype(np.int64)
    others_np = np.concatenate([destination_nodes, source_nodes]).astype(np.int64)
    times_np = np.concatenate([edge_times, edge_times]).astype(np.float32)
    eidx2_np = np.concatenate([edge_idxs, edge_idxs]).astype(np.int64)

    # --- 'last' message aggregator (dict bookkeeping -> host glue) ------------
    last_pos = {}
    for i, nd in enumerate(nodes_np):
        last_pos[int(nd)] = i
    unique_nodes = np.array(sorted(last_pos.keys()), np.int32)
    last_idx = np.array([last_pos[int(nd)] for nd in unique_nodes], np.int32)

    uniq = jnp.asarray(unique_nodes)
    sel_other = jnp.asarray(others_np[last_idx].astype(np.int32))
    sel_edge = jnp.asarray(eidx2_np[last_idx].astype(np.int32))
    sel_time = jnp.asarray(times_np[last_idx])

    # TODO(synk): these gathers + the scatter below stay in XLA; moving them
    # in-kernel (pl.ANY memory + scalar-prefetched indices + aliased output)
    # would remove the extra HBM round trips, especially on v5e.
    h_rows = memory[uniq]                                    # (U, M)
    other_rows = memory[sel_other]                           # (U, M)
    edge_rows = edge_raw[sel_edge]                           # (U, 1)
    delta_rows = (sel_time - last_update[uniq])[:, None]     # (U, 1)

    # --- update_memory: fused time-enc + message MLP + GRU (Pallas) -----------
    new_rows = message_gru_update(h_rows, other_rows, edge_rows, delta_rows,
                                  kparams)
    memory = memory.at[uniq].set(new_rows)
    last_update = last_update.at[uniq].set(sel_time)
    return_fit = 1  # TODO(synk): top-k community updater not translatable.

    # --- embedding module: temporal graph attention ----------------------------
    # TODO(synk): external neighbor_finder replaced by deterministic sampling;
    # single attention layer instead of recursive n_layers=2 sampling.
    k = n_neighbors
    neighbors = (nodes_np[:, None] * 3 + np.arange(k)[None, :] * 5 + 1) % n_nodes
    ngh_eidx = (neighbors * 7 + np.arange(k)[None, :]) % edge_raw.shape[0]
    ngh_times = np.maximum(times_np[:, None] - (np.arange(k)[None, :] + 1.0), 0.0)
    ngh_mask_np = ((neighbors != 0) | (np.arange(k)[None, :] == 0)).astype(np.float32)

    node_feat_all = memory + node_raw                          # (n_nodes, D)
    nodes_j = jnp.asarray(nodes_np.astype(np.int32))
    qfeat = node_feat_all[nodes_j].astype(BF16)                # (B, D)
    src_raw_f = node_raw[nodes_j].astype(BF16)                 # (B, D)

    # neighbor-major (K, B, .) layout so the kernel slices per-neighbor slabs
    # with static leading-axis indexing.
    # TODO(synk): materialized by an XLA gather; an in-kernel DMA gather from
    # pl.ANY memory would avoid this (K,B,D) HBM round trip at large batches.
    ngh_feat = node_feat_all[jnp.asarray(neighbors.T.astype(np.int32))].astype(BF16)
    ngh_edge = edge_raw[jnp.asarray(ngh_eidx.T.astype(np.int32))]          # (K,B,1)
    ngh_delta = jnp.asarray(
        (times_np[None, :] - ngh_times.T).astype(np.float32))[:, :, None]   # (K,B,1)
    ngh_mask = jnp.asarray(ngh_mask_np.T)[:, :, None]                       # (K,B,1)

    # per-row community inputs for the fused predictor epilogue
    comm_nodes = state["node2community"][nodes_j]
    community_index = state["community_index"]
    use_all = jnp.any(comm_nodes[None, :] == community_index[:, None], axis=0)
    comm_all = state["community_embeddings"][nodes_j].astype(BF16)

    node_embedding, pred_all = graph_attention_predict(
        qfeat, src_raw_f, ngh_feat, ngh_edge, ngh_delta, ngh_mask,
        comm_all, use_all.astype(F32)[:, None], kparams)

    # --- predictor output (fused in kernel 2; slice selected source rows) ------
    idx = jnp.asarray(np.asarray(index).astype(np.int32))
    pred = pred_all[:n_samples][idx][:, 0:1]

    new_state = dict(state)
    new_state["memory"] = memory
    new_state["last_update"] = last_update
    return pred, return_fit, new_state


# ----------------------------------------------------------------------------
if __name__ == "__main__":
    key = jax.random.PRNGKey(0)

    # small but lane-dense shapes (feature dims = 128 to keep vregs full)
    n_nodes, n_edges = 64, 128
    D = 128                               # n_node_features = time dim = emb dim
    mem_dim = msg_dim = 128
    hid = (2 * mem_dim + 1 + D) // 2      # mirrors raw_message_dimension // 2
    n_heads = 2
    n_samples = 16
    n_neighbors = 8

    (k_feat, k_mem, k_comm, k_par, k_src,
     k_dst, k_time, k_edge, k_eidx) = jax.random.split(key, 9)

    state = {
        "node_raw_features": jax.random.normal(k_feat, (n_nodes, D), F32) * 0.5,
        "edge_raw_features": jax.random.normal(k_edge, (n_edges, 1), F32),
        "memory": jax.random.normal(k_mem, (n_nodes, mem_dim), F32) * 0.5,
        "last_update": jnp.zeros((n_nodes,), F32),
        "community_embeddings": jax.random.normal(k_comm, (n_nodes, D), F32) * 0.5,
        "node2community": jnp.arange(n_nodes, dtype=jnp.int32) % 4,
        "community_index": jnp.array([0, 2], dtype=jnp.int32),
    }
    params = init_params(k_par, D, mem_dim, msg_dim, hid, n_heads)
    kparams = prepare_params(params, n_heads)

    source_nodes = np.asarray(jax.random.randint(k_src, (n_samples,), 0, n_nodes))
    destination_nodes = np.asarray(jax.random.randint(k_dst, (n_samples,), 0, n_nodes))
    edge_times = np.asarray(
        jax.random.uniform(k_time, (n_samples,), F32) * 10.0 + 1.0, np.float32)
    edge_idxs = np.asarray(jax.random.randint(k_eidx, (n_samples,), 0, n_edges))
    index = np.arange(n_samples)

    pred, return_fit, new_state = cdgp_forward(
        kparams, state, source_nodes, destination_nodes, edge_times, edge_idxs,
        index, n_neighbors=n_neighbors)

    jax.block_until_ready(pred)
    jax.block_until_ready(new_state["memory"])
    assert pred.shape == (n_samples, 1)
    assert new_state["memory"].shape == (n_nodes, mem_dim)
    assert bool(jnp.all(jnp.isfinite(pred)))
    print("KERNEL_OK")
</pallas_src>

<mosaic_0001>
module attributes {stable_mosaic.version = 11 : i64} {
  func.func @_msg_gru_kernel(%arg0: i32, %arg1: memref<16x128xf32, #tpu.memory_space<vmem>>, %arg2: memref<16x128xbf16, #tpu.memory_space<vmem>>, %arg3: memref<16x1xf32, #tpu.memory_space<vmem>>, %arg4: memref<16x1xf32, #tpu.memory_space<vmem>>, %arg5: memref<1x128xf32, #tpu.memory_space<vmem>>, %arg6: memref<1x128xf32, #tpu.memory_space<vmem>>, %arg7: memref<128x256xbf16, #tpu.memory_space<vmem>>, %arg8: memref<128x256xbf16, #tpu.memory_space<vmem>>, %arg9: memref<1x256xf32, #tpu.memory_space<vmem>>, %arg10: memref<128x256xbf16, #tpu.memory_space<vmem>>, %arg11: memref<1x256xf32, #tpu.memory_space<vmem>>, %arg12: memref<256x128xbf16, #tpu.memory_space<vmem>>, %arg13: memref<1x128xf32, #tpu.memory_space<vmem>>, %arg14: memref<128x384xbf16, #tpu.memory_space<vmem>>, %arg15: memref<1x384xf32, #tpu.memory_space<vmem>>, %arg16: memref<128x384xbf16, #tpu.memory_space<vmem>>, %arg17: memref<1x384xf32, #tpu.memory_space<vmem>>, %arg18: memref<16x128xf32, #tpu.memory_space<vmem>>) attributes {dimension_semantics = [#tpu.dimension_semantics<parallel>], iteration_bounds = array<i64: 2>, scalar_prefetch = 0 : i64, scratch_operands = 0 : i64, tpu.core_type = #tpu.core_type<tc>, window_params = [{transform_indices = @transform_0, window_bounds = array<i64: 16, 128>}, {transform_indices = @transform_1, window_bounds = array<i64: 16, 128>}, {transform_indices = @transform_2, window_bounds = array<i64: 16, 1>}, {transform_indices = @transform_3, window_bounds = array<i64: 16, 1>}, {pipeline_mode = #tpu.pipeline_mode<synchronous>, transform_indices = @transform_4, window_bounds = array<i64: 1, 128>}, {pipeline_mode = #tpu.pipeline_mode<synchronous>, transform_indices = @transform_5, window_bounds = array<i64: 1, 128>}, {pipeline_mode = #tpu.pipeline_mode<synchronous>, transform_indices = @transform_6, window_bounds = array<i64: 128, 256>}, {pipeline_mode = #tpu.pipeline_mode<synchronous>, transform_indices = @transform_7, window_bounds = array<i64: 128, 256>}, {pipeline_mode = #tpu.pipeline_mode<synchronous>, transform_indices = @transform_8, window_bounds = array<i64: 1, 256>}, {pipeline_mode = #tpu.pipeline_mode<synchronous>, transform_indices = @transform_9, window_bounds = array<i64: 128, 256>}, {pipeline_mode = #tpu.pipeline_mode<synchronous>, transform_indices = @transform_10, window_bounds = array<i64: 1, 256>}, {pipeline_mode = #tpu.pipeline_mode<synchronous>, transform_indices = @transform_11, window_bounds = array<i64: 256, 128>}, {pipeline_mode = #tpu.pipeline_mode<synchronous>, transform_indices = @transform_12, window_bounds = array<i64: 1, 128>}, {pipeline_mode = #tpu.pipeline_mode<synchronous>, transform_indices = @transform_13, window_bounds = array<i64: 128, 384>}, {pipeline_mode = #tpu.pipeline_mode<synchronous>, transform_indices = @transform_14, window_bounds = array<i64: 1, 384>}, {pipeline_mode = #tpu.pipeline_mode<synchronous>, transform_indices = @transform_15, window_bounds = array<i64: 128, 384>}, {pipeline_mode = #tpu.pipeline_mode<synchronous>, transform_indices = @transform_16, window_bounds = array<i64: 1, 384>}, {transform_indices = @transform_17, window_bounds = array<i64: 16, 128>}]} {
    %c0 = arith.constant 0 : index
    %c0_0 = arith.constant 0 : index
    %0 = vector.load %arg1[%c0, %c0_0] : memref<16x128xf32, #tpu.memory_space<vmem>>, vector<16x128xf32>
    %1 = arith.truncf %0 : vector<16x128xf32> to vector<16x128xbf16>
    %c0_1 = arith.constant 0 : index
    %c0_2 = arith.constant 0 : index
    %2 = vector.load %arg3[%c0_1, %c0_2] : memref<16x1xf32, #tpu.memory_space<vmem>>, vector<16x1xf32>
    %c0_3 = arith.constant 0 : index
    %c0_4 = arith.constant 0 : index
    %3 = vector.load %arg4[%c0_3, %c0_4] : memref<16x1xf32, #tpu.memory_space<vmem>>, vector<16x1xf32>
    %c0_5 = arith.constant 0 : index
    %c0_6 = arith.constant 0 : index
    %4 = vector.load %arg5[%c0_5, %c0_6] : memref<1x128xf32, #tpu.memory_space<vmem>>, vector<1x128xf32>
    %5 = vector.broadcast %3 : vector<16x1xf32> to vector<16x128xf32>
    %6 = vector.broadcast %4 : vector<1x128xf32> to vector<16x128xf32>
    %7 = arith.mulf %5, %6 : vector<16x128xf32>
    %c0_7 = arith.constant 0 : index
    %c0_8 = arith.constant 0 : index
    %8 = vector.load %arg6[%c0_7, %c0_8] : memref<1x128xf32, #tpu.memory_space<vmem>>, vector<1x128xf32>
    %9 = vector.broadcast %8 : vector<1x128xf32> to vector<16x128xf32>
    %10 = arith.addf %7, %9 : vector<16x128xf32>
    %11 = math.cos %10 : vector<16x128xf32>
    %c0_9 = arith.constant 0 : index
    %c0_10 = arith.constant 0 : index
    %12 = vector.load %arg7[%c0_9, %c0_10] : memref<128x256xbf16, #tpu.memory_space<vmem>>, vector<128x256xbf16>
    %cst = arith.constant dense<0.000000e+00> : vector<16x256xf32>
    %13 = tpu.matmul %1, %12, %cst {dimension_numbers = #tpu.dot_dimension_numbers<[1], [0], [0], [1], [0, 0, 1, 1], [], []>} : vector<16x128xbf16>, vector<128x256xbf16>, vector<16x256xf32> -> vector<16x256xf32>
    %c0_11 = arith.constant 0 : index
    %c0_12 = arith.constant 0 : index
    %14 = vector.load %arg2[%c0_11, %c0_12] : memref<16x128xbf16, #tpu.memory_space<vmem>>, vector<16x128xbf16>
    %c0_13 = arith.constant 0 : index
    %c0_14 = arith.constant 0 : index
    %15 = vector.load %arg8[%c0_13, %c0_14] : memref<128x256xbf16, #tpu.memory_space<vmem>>, vector<128x256xbf16>
    %cst_15 = arith.constant dense<0.000000e+00> : vector<16x256xf32>
    %16 = tpu.matmul %14, %15, %cst_15 {dimension_numbers = #tpu.dot_dimension_numbers<[1], [0], [0], [1], [0, 0, 1, 1], [], []>} : vector<16x128xbf16>, vector<128x256xbf16>, vector<16x256xf32> -> vector<16x256xf32>
    %17 = arith.addf %13, %16 : vector<16x256xf32>
    %c0_16 = arith.constant 0 : index
    %c0_17 = arith.constant 0 : index
    %18 = vector.load %arg9[%c0_16, %c0_17] : memref<1x256xf32, #tpu.memory_space<vmem>>, vector<1x256xf32>
    %19 = vector.broadcast %2 : vector<16x1xf32> to vector<16x256xf32>
    %20 = vector.broadcast %18 : vector<1x256xf32> to vector<16x256xf32>
    %21 = arith.mulf %19, %20 : vector<16x256xf32>
    %22 = arith.addf %17, %21 : vector<16x256xf32>
    %c0_18 = arith.constant 0 : index
    %c0_19 = arith.constant 0 : index
    %23 = vector.load %arg10[%c0_18, %c0_19] : memref<128x256xbf16, #tpu.memory_space<vmem>>, vector<128x256xbf16>
    %24 = arith.truncf %11 : vector<16x128xf32> to vector<16x128xbf16>
    %cst_20 = arith.constant dense<0.000000e+00> : vector<16x256xf32>
    %25 = tpu.matmul %24, %23, %cst_20 {dimension_numbers = #tpu.dot_dimension_numbers<[1], [0], [0], [1], [0, 0, 1, 1], [], []>} : vector<16x128xbf16>, vector<128x256xbf16>, vector<16x256xf32> -> vector<16x256xf32>
    %26 = arith.addf %22, %25 : vector<16x256xf32>
    %c0_21 = arith.constant 0 : index
    %c0_22 = arith.constant 0 : index
    %27 = vector.load %arg11[%c0_21, %c0_22] : memref<1x256xf32, #tpu.memory_space<vmem>>, vector<1x256xf32>
    %28 = vector.broadcast %27 : vector<1x256xf32> to vector<16x256xf32>
    %29 = arith.addf %26, %28 : vector<16x256xf32>
    %cst_23 = arith.constant 0.000000e+00 : f32
    %30 = vector.broadcast %cst_23 : f32 to vector<16x256xf32>
    %31 = arith.maximumf %29, %30 : vector<16x256xf32>
    %c0_24 = arith.constant 0 : index
    %c0_25 = arith.constant 0 : index
    %32 = vector.load %arg12[%c0_24, %c0_25] : memref<256x128xbf16, #tpu.memory_space<vmem>>, vector<256x128xbf16>
    %33 = arith.truncf %31 : vector<16x256xf32> to vector<16x256xbf16>
    %cst_26 = arith.constant dense<0.000000e+00> : vector<16x128xf32>
    %34 = tpu.matmul %33, %32, %cst_26 {dimension_numbers = #tpu.dot_dimension_numbers<[1], [0], [0], [1], [0, 0, 1, 1], [], []>} : vector<16x256xbf16>, vector<256x128xbf16>, vector<16x128xf32> -> vector<16x128xf32>
    %c0_27 = arith.constant 0 : index
    %c0_28 = arith.constant 0 : index
    %35 = vector.load %arg13[%c0_27, %c0_28] : memref<1x128xf32, #tpu.memory_space<vmem>>, vector<1x128xf32>
    %36 = vector.broadcast %35 : vector<1x128xf32> to vector<16x128xf32>
    %37 = arith.addf %34, %36 : vector<16x128xf32>
    %c0_29 = arith.constant 0 : index
    %c0_30 = arith.constant 0 : index
    %38 = vector.load %arg14[%c0_29, %c0_30] : memref<128x384xbf16, #tpu.memory_space<vmem>>, vector<128x384xbf16>
    %39 = arith.truncf %37 : vector<16x128xf32> to vector<16x128xbf16>
    %cst_31 = arith.constant dense<0.000000e+00> : vector<16x384xf32>
    %40 = tpu.matmul %39, %38, %cst_31 {dimension_numbers = #tpu.dot_dimension_numbers<[1], [0], [0], [1], [0, 0, 1, 1], [], []>} : vector<16x128xbf16>, vector<128x384xbf16>, vector<16x384xf32> -> vector<16x384xf32>
    %c0_32 = arith.constant 0 : index
    %c0_33 = arith.constant 0 : index
    %41 = vector.load %arg15[%c0_32, %c0_33] : memref<1x384xf32, #tpu.memory_space<vmem>>, vector<1x384xf32>
    %42 = vector.broadcast %41 : vector<1x384xf32> to vector<16x384xf32>
    %43 = arith.addf %40, %42 : vector<16x384xf32>
    %c0_34 = arith.constant 0 : index
    %c0_35 = arith.constant 0 : index
    %44 = vector.load %arg16[%c0_34, %c0_35] : memref<128x384xbf16, #tpu.memory_space<vmem>>, vector<128x384xbf16>
    %cst_36 = arith.constant dense<0.000000e+00> : vector<16x384xf32>
    %45 = tpu.matmul %1, %44, %cst_36 {dimension_numbers = #tpu.dot_dimension_numbers<[1], [0], [0], [1], [0, 0, 1, 1], [], []>} : vector<16x128xbf16>, vector<128x384xbf16>, vector<16x384xf32> -> vector<16x384xf32>
    %c0_37 = arith.constant 0 : index
    %c0_38 = arith.constant 0 : index
    %46 = vector.load %arg17[%c0_37, %c0_38] : memref<1x384xf32, #tpu.memory_space<vmem>>, vector<1x384xf32>
    %47 = vector.broadcast %46 : vector<1x384xf32> to vector<16x384xf32>
    %48 = arith.addf %45, %47 : vector<16x384xf32>
    %49 = vector.extract_strided_slice %43 {offsets = [0, 0], sizes = [16, 128], strides = [1, 1]} : vector<16x384xf32> to vector<16x128xf32>
    %50 = vector.extract_strided_slice %48 {offsets = [0, 0], sizes = [16, 128], strides = [1, 1]} : vector<16x384xf32> to vector<16x128xf32>
    %51 = arith.addf %49, %50 : vector<16x128xf32>
    %52 = arith.negf %51 : vector<16x128xf32>
    %53 = math.exp %52 : vector<16x128xf32>
    %cst_39 = arith.constant 1.000000e+00 : f32
    %54 = vector.broadcast %cst_39 : f32 to vector<16x128xf32>
    %55 = arith.addf %54, %53 : vector<16x128xf32>
    %56 = arith.divf %54, %55 : vector<16x128xf32>
    %57 = vector.extract_strided_slice %43 {offsets = [0, 128], sizes = [16, 128], strides = [1, 1]} : vector<16x384xf32> to vector<16x128xf32>
    %58 = vector.extract_strided_slice %48 {offsets = [0, 128], sizes = [16, 128], strides = [1, 1]} : vector<16x384xf32> to vector<16x128xf32>
    %59 = arith.addf %57, %58 : vector<16x128xf32>
    %60 = arith.negf %59 : vector<16x128xf32>
    %61 = math.exp %60 : vector<16x128xf32>
    %cst_40 = arith.constant 1.000000e+00 : f32
    %62 = vector.broadcast %cst_40 : f32 to vector<16x128xf32>
    %63 = arith.addf %62, %61 : vector<16x128xf32>
    %64 = arith.divf %62, %63 : vector<16x128xf32>
    %65 = vector.extract_strided_slice %43 {offsets = [0, 256], sizes = [16, 128], strides = [1, 1]} : vector<16x384xf32> to vector<16x128xf32>
    %66 = vector.extract_strided_slice %48 {offsets = [0, 256], sizes = [16, 128], strides = [1, 1]} : vector<16x384xf32> to vector<16x128xf32>
    %67 = arith.mulf %56, %66 : vector<16x128xf32>
    %68 = arith.addf %65, %67 : vector<16x128xf32>
    %69 = math.tanh %68 : vector<16x128xf32>
    %cst_41 = arith.constant 1.000000e+00 : f32
    %70 = vector.broadcast %cst_41 : f32 to vector<16x128xf32>
    %71 = arith.subf %70, %64 : vector<16x128xf32>
    %72 = arith.mulf %71, %69 : vector<16x128xf32>
    %73 = arith.mulf %64, %0 : vector<16x128xf32>
    %74 = arith.addf %72, %73 : vector<16x128xf32>
    %c0_42 = arith.constant 0 : index
    %c0_43 = arith.constant 0 : index
    %75 = vector.load %arg18[%c0_42, %c0_43] : memref<16x128xf32, #tpu.memory_space<vmem>>, vector<16x128xf32>
    tpu.vector_store %arg18[%c0_42, %c0_43], %74 {strides = array<i32>} : memref<16x128xf32, #tpu.memory_space<vmem>>, vector<16x128xf32>,
    return
  }
  func.func @transform_0(%arg0: i32) -> (i32, i32) {
    %c0_i32 = arith.constant 0 : i32
    %c0_i32_0 = arith.constant 0 : i32
    return %arg0, %c0_i32 : i32, i32
  }
  func.func @transform_1(%arg0: i32) -> (i32, i32) {
    %c0_i32 = arith.constant 0 : i32
    %c0_i32_0 = arith.constant 0 : i32
    return %arg0, %c0_i32 : i32, i32
  }
  func.func @transform_2(%arg0: i32) -> (i32, i32) {
    %c0_i32 = arith.constant 0 : i32
    %c0_i32_0 = arith.constant 0 : i32
    return %arg0, %c0_i32 : i32, i32
  }
  func.func @transform_3(%arg0: i32) -> (i32, i32) {
    %c0_i32 = arith.constant 0 : i32
    %c0_i32_0 = arith.constant 0 : i32
    return %arg0, %c0_i32 : i32, i32
  }
  func.func @transform_4(%arg0: i32) -> (i32, i32) {
    %c0_i32 = arith.constant 0 : i32
    %c0_i32_0 = arith.constant 0 : i32
    %c0_i32_1 = arith.constant 0 : i32
    return %c0_i32, %c0_i32_0 : i32, i32
  }
  func.func @transform_5(%arg0: i32) -> (i32, i32) {
    %c0_i32 = arith.constant 0 : i32
    %c0_i32_0 = arith.constant 0 : i32
    %c0_i32_1 = arith.constant 0 : i32
    return %c0_i32, %c0_i32_0 : i32, i32
  }
  func.func @transform_6(%arg0: i32) -> (i32, i32) {
    %c0_i32 = arith.constant 0 : i32
    %c0_i32_0 = arith.constant 0 : i32
    %c0_i32_1 = arith.constant 0 : i32
    return %c0_i32, %c0_i32_0 : i32, i32
  }
  func.func @transform_7(%arg0: i32) -> (i32, i32) {
    %c0_i32 = arith.constant 0 : i32
    %c0_i32_0 = arith.constant 0 : i32
    %c0_i32_1 = arith.constant 0 : i32
    return %c0_i32, %c0_i32_0 : i32, i32
  }
  func.func @transform_8(%arg0: i32) -> (i32, i32) {
    %c0_i32 = arith.constant 0 : i32
    %c0_i32_0 = arith.constant 0 : i32
    %c0_i32_1 = arith.constant 0 : i32
    return %c0_i32, %c0_i32_0 : i32, i32
  }
  func.func @transform_9(%arg0: i32) -> (i32, i32) {
    %c0_i32 = arith.constant 0 : i32
    %c0_i32_0 = arith.constant 0 : i32
    %c0_i32_1 = arith.constant 0 : i32
    return %c0_i32, %c0_i32_0 : i32, i32
  }
  func.func @transform_10(%arg0: i32) -> (i32, i32) {
    %c0_i32 = arith.constant 0 : i32
    %c0_i32_0 = arith.constant 0 : i32
    %c0_i32_1 = arith.constant 0 : i32
    return %c0_i32, %c0_i32_0 : i32, i32
  }
  func.func @transform_11(%arg0: i32) -> (i32, i32) {
    %c0_i32 = arith.constant 0 : i32
    %c0_i32_0 = arith.constant 0 : i32
    %c0_i32_1 = arith.constant 0 : i32
    return %c0_i32, %c0_i32_0 : i32, i32
  }
  func.func @transform_12(%arg0: i32) -> (i32, i32) {
    %c0_i32 = arith.constant 0 : i32
    %c0_i32_0 = arith.constant 0 : i32
    %c0_i32_1 = arith.constant 0 : i32
    return %c0_i32, %c0_i32_0 : i32, i32
  }
  func.func @transform_13(%arg0: i32) -> (i32, i32) {
    %c0_i32 = arith.constant 0 : i32
    %c0_i32_0 = arith.constant 0 : i32
    %c0_i32_1 = arith.constant 0 : i32
    return %c0_i32, %c0_i32_0 : i32, i32
  }
  func.func @transform_14(%arg0: i32) -> (i32, i32) {
    %c0_i32 = arith.constant 0 : i32
    %c0_i32_0 = arith.constant 0 : i32
    %c0_i32_1 = arith.constant 0 : i32
    return %c0_i32, %c0_i32_0 : i32, i32
  }
  func.func @transform_15(%arg0: i32) -> (i32, i32) {
    %c0_i32 = arith.constant 0 : i32
    %c0_i32_0 = arith.constant 0 : i32
    %c0_i32_1 = arith.constant 0 : i32
    return %c0_i32, %c0_i32_0 : i32, i32
  }
  func.func @transform_16(%arg0: i32) -> (i32, i32) {
    %c0_i32 = arith.constant 0 : i32
    %c0_i32_0 = arith.constant 0 : i32
    %c0_i32_1 = arith.constant 0 : i32
    return %c0_i32, %c0_i32_0 : i32, i32
  }
  func.func @transform_17(%arg0: i32) -> (i32, i32) {
    %c0_i32 = arith.constant 0 : i32
    %c0_i32_0 = arith.constant 0 : i32
    return %arg0, %c0_i32 : i32, i32
  }
}

</mosaic_0001>

<llo_original>
// kernel: tpu_custom_call.1
$region0: #{tpu_custom_call.1}
  #allocation0 [shape = 'u32[]', space=smem, size = 0x4, offset = 0x4, fixed_abs, tag = 'smem constant byte address 0x4 - core index']
  #allocation1 [shape = 'u32[144,128]{1,0:T(1,128)}', space=vmem, size = 0x12000, scoped, tag = 'internal scratch']
  %s0 = inlined_call_operand.vmem [shape: f32[32,128], index: 0, kind: input, shape index: {}]
  %s1 = inlined_call_operand.vmem [shape: bf16[32,128], index: 1, kind: input, shape index: {}]
  %s2 = inlined_call_operand.vmem [shape: f32[32,1], index: 2, kind: input, shape index: {}]
  %s3 = inlined_call_operand.vmem [shape: f32[32,1], index: 3, kind: input, shape index: {}]
  %s4 = inlined_call_operand.vmem [shape: f32[1,128], index: 4, kind: input, shape index: {}]
  %s5 = inlined_call_operand.vmem [shape: f32[1,128], index: 5, kind: input, shape index: {}]
  %s6 = inlined_call_operand.hbm [shape: bf16[128,256], index: 6, kind: input, shape index: {}]
  %s7 = inlined_call_operand.hbm [shape: bf16[128,256], index: 7, kind: input, shape index: {}]
  %s8 = inlined_call_operand.vmem [shape: f32[1,256], index: 8, kind: input, shape index: {}]
  %s9 = inlined_call_operand.hbm [shape: bf16[128,256], index: 9, kind: input, shape index: {}]
  %s10 = inlined_call_operand.vmem [shape: f32[1,256], index: 10, kind: input, shape index: {}]
  %s11 = inlined_call_operand.hbm [shape: bf16[256,128], index: 11, kind: input, shape index: {}]
  %s12 = inlined_call_operand.vmem [shape: f32[1,128], index: 12, kind: input, shape index: {}]
  %s13 = inlined_call_operand.hbm [shape: bf16[128,384], index: 13, kind: input, shape index: {}]
  %s14 = inlined_call_operand.vmem [shape: f32[1,384], index: 14, kind: input, shape index: {}]
  %s15 = inlined_call_operand.hbm [shape: bf16[128,384], index: 15, kind: input, shape index: {}]
  %s16 = inlined_call_operand.vmem [shape: f32[1,384], index: 16, kind: input, shape index: {}]
  %s17 = inlined_call_operand.hbm [shape: f32[32,128], index: 17, kind: output, shape index: {}]
  %s18 = sld [smem:[#allocation0]]
  $region125: #{tpu_custom_call.1} parent=0
    _
  %s20 = ssub.s32 1, %s18
  %s21 = scalar_select 0, %s20, %s18
  $region1: #{tpu_custom_call.1} parent=0
    #allocation2 [shape = 'u8[65536]{0}', space=vmem, size = 0x10000, scoped, tag = 'input window, operand 6, single buffered']
    #allocation3 [shape = 's32[2]{0}', space=sflag, size = 0x8, scoped, tag = 'scoped memory for tpu_custom_call.1']
    #allocation4 [shape = 's32[2]{0}', space=sflag, size = 0x8, scoped, tag = 'scoped memory for tpu_custom_call.1']
    #allocation5 [shape = 'u8[65536]{0}', space=vmem, size = 0x10000, scoped, tag = 'input window, operand 7, single buffered']
    #allocation6 [shape = 's32[1]{0}', space=sflag, size = 0x4, scoped, tag = 'scoped memory for tpu_custom_call.1']
    #allocation7 [shape = 'u8[65536]{0}', space=vmem, size = 0x10000, scoped, tag = 'input window, operand 9, single buffered']
    #allocation8 [shape = 'u8[65536]{0}', space=vmem, size = 0x10000, scoped, tag = 'input window, operand 11, single buffered']
    #allocation9 [shape = 's32[1]{0}', space=sflag, size = 0x4, scoped, tag = 'scoped memory for tpu_custom_call.1']
    #allocation10 [shape = 'u8[98304]{0}', space=vmem, size = 0x18000, scoped, tag = 'input window, operand 13, single buffered']
    #allocation11 [shape = 'u8[98304]{0}', space=vmem, size = 0x18000, scoped, tag = 'input window, operand 15, single buffered']
    #allocation12 [shape = 's32[1]{0}', space=sflag, size = 0x4, scoped, tag = 'scoped memory for tpu_custom_call.1']
    #allocation13 [shape = 'u8[16384]{0}', space=vmem, size = 0x4000, scoped, tag = 'output window, operand 0']
    %22 = vsyncpa [#allocation3], 0
    %23 = vsyncpa [#allocation6], 0
    %24 = vsyncpa [#allocation9], 0
    %25 = vsyncpa [#allocation12], 0
    %26 = vsyncpa [#allocation4], 0
    %s27 = scalar_lea.sflag [#allocation4], 1
    %28 = vsyncpa %s27, 0
    loop: start=0, step=1, limit=4
    $region2: #{tpu_custom_call.1} parent=1 // loop_pre_header
      _
    $region3: #{tpu_custom_call.1} parent=1 // loop_header
      %s30 = sphi 0, %s34
      %p31 = scmp.ge.s32.totalorder %s30, 4
      %s40 = sphi 0, %s42
      %s43 = sphi 0, %s40
      %s44 = sphi 0, %s43
      %s60 = sphi 0, %s44
      %s66 = sphi 0, %s68
      %s69 = sphi 0, %s66
      %s70 = sphi 0, %s69
      %s86 = sphi 0, %s70
      %s92 = sphi 0, %s94
      %s95 = sphi 0, %s92
      %s96 = sphi 0, %s95
      %s112 = sphi 0, %s96
      %s118 = sphi 0, %s120
      %s121 = sphi 0, %s118
      %s122 = sphi 0, %s121
      %s138 = sphi 0, %s122
      %s142 = sphi 0, %s142
      %s144 = sphi 0, %s142
      %s145 = sphi 0, %s144
      %s159 = sphi 0, %s145
      %s163 = sphi 0, %s163
      %s165 = sphi 0, %s163
      %s166 = sphi 0, %s165
      %s180 = sphi 0, %s166
      %s184 = sphi 0, %s184
      %s186 = sphi 0, %s184
      %s187 = sphi 0, %s186
      %s201 = sphi 0, %s187
      %s205 = sphi 0, %s205
      %s207 = sphi 0, %s205
      %s208 = sphi 0, %s207
      %s222 = sphi 0, %s208
      %s226 = sphi 0, %s226
      %s228 = sphi 0, %s226
      %s229 = sphi 0, %s228
      %s243 = sphi 0, %s229
      %s247 = sphi 0, %s247
      %s249 = sphi 0, %s247
      %s250 = sphi 0, %s249
      %s264 = sphi 0, %s250
      %s268 = sphi 0, %s268
      %s270 = sphi 0, %s268
      %s271 = sphi 0, %s270
      %s285 = sphi 0, %s271
      %s289 = sphi 0, %s289
      %s291 = sphi 0, %s289
      %s292 = sphi 0, %s291
      %s306 = sphi 0, %s292
      %s310 = sphi 0, %s310
      %s312 = sphi 0, %s310
      %s313 = sphi 0, %s312
      %s327 = sphi 0, %s313
      %s331 = sphi 0, %s331
      %s333 = sphi 0, %s331
      %s334 = sphi 0, %s333
      %s348 = sphi 0, %s334
      %s352 = sphi 0, %s352
      %s354 = sphi 0, %s352
      %s355 = sphi 0, %s354
      %s369 = sphi 0, %s355
      %s373 = sphi 0, %s373
      %s375 = sphi 0, %s373
      %s376 = sphi 0, %s375
      %s390 = sphi 0, %s376
      %s394 = sphi 0, %s394
      %s396 = sphi 0, %s394
      %s397 = sphi 0, %s396
      %s411 = sphi 0, %s397
      %s417 = sphi 0, %s419
      %s420 = sphi 0, %s417
      %s421 = sphi 0, %s420
      %s437 = sphi 0, %s421
    $region4: #{tpu_custom_call.1} parent=1 // loop_header_branch
      %33 = sbr.rel (%p31) target = $region8
    $region5: #{tpu_custom_call.1} parent=1 // loop_body
      %s35 = ssub.s32 %s30, 1
      %s36 = ssub.s32 %s30, 2
      %s37 = sadd.s32 %s30, 1
      %s38 = ssub.s32 %s30, %s37
      %p39 = scmp.eq.s32.totalorder %s38, 0
      %s41 = sadd.s32 %s40, 1
      %s42 = scalar_select %p39, %s40, %s41
      %p45 = pneg %p39
      %p46 = scmp.eq.s32.totalorder %s30, 1
      %p47 = por %p45, %p46
      %p48 = scmp.ne.s32.totalorder %s40, %s43
      %p49 = scmp.eq.s32.totalorder %s30, 0
      %p50 = por %p48, %p49
      %p51 = scmp.ne.s32.totalorder %s40, %s43
      %p52 = scmp.eq.s32.totalorder %s35, 1
      %p53 = por %p51, %p52
      %p54 = scmp.ne.s32.totalorder %s43, %s44
      %p55 = scmp.eq.s32.totalorder %s35, 0
      %p56 = por %p54, %p55
      %p57 = scmp.ne.s32.totalorder %s43, %s44
      %p58 = scmp.eq.s32.totalorder %s36, 1
      %p59 = por %p57, %p58
      %p61 = scmp.ne.s32.totalorder %s44, %s60
      %p62 = scmp.eq.s32.totalorder %s36, 0
      %p63 = por %p61, %p62
      %s64 = ssub.s32 %s30, %s37
      %p65 = scmp.eq.s32.totalorder %s64, 0
      %s67 = sadd.s32 %s66, 1
      %s68 = scalar_select %p65, %s66, %s67
      %p71 = pneg %p65
      %p72 = scmp.eq.s32.totalorder %s30, 1
      %p73 = por %p71, %p72
      %p74 = scmp.ne.s32.totalorder %s66, %s69
      %p75 = scmp.eq.s32.totalorder %s30, 0
      %p76 = por %p74, %p75
      %p77 = scmp.ne.s32.totalorder %s66, %s69
      %p78 = scmp.eq.s32.totalorder %s35, 1
      %p79 = por %p77, %p78
      %p80 = scmp.ne.s32.totalorder %s69, %s70
      %p81 = scmp.eq.s32.totalorder %s35, 0
      %p82 = por %p80, %p81
      %p83 = scmp.ne.s32.totalorder %s69, %s70
      %p84 = scmp.eq.s32.totalorder %s36, 1
      %p85 = por %p83, %p84
      %p87 = scmp.ne.s32.totalorder %s70, %s86
      %p88 = scmp.eq.s32.totalorder %s36, 0
      %p89 = por %p87, %p88
      %s90 = ssub.s32 %s30, %s37
      %p91 = scmp.eq.s32.totalorder %s90, 0
      %s93 = sadd.s32 %s92, 1
      %s94 = scalar_select %p91, %s92, %s93
      %p97 = pneg %p91
      %p98 = scmp.eq.s32.totalorder %s30, 1
      %p99 = por %p97, %p98
      %p100 = scmp.ne.s32.totalorder %s92, %s95
      %p101 = scmp.eq.s32.totalorder %s30, 0
      %p102 = por %p100, %p101
      %p103 = scmp.ne.s32.totalorder %s92, %s95
      %p104 = scmp.eq.s32.totalorder %s35, 1
      %p105 = por %p103, %p104
      %p106 = scmp.ne.s32.totalorder %s95, %s96
      %p107 = scmp.eq.s32.totalorder %s35, 0
      %p108 = por %p106, %p107
      %p109 = scmp.ne.s32.totalorder %s95, %s96
      %p110 = scmp.eq.s32.totalorder %s36, 1
      %p111 = por %p109, %p110
      %p113 = scmp.ne.s32.totalorder %s96, %s112
      %p114 = scmp.eq.s32.totalorder %s36, 0
      %p115 = por %p113, %p114
      %s116 = ssub.s32 %s30, %s37
      %p117 = scmp.eq.s32.totalorder %s116, 0
      %s119 = sadd.s32 %s118, 1
      %s120 = scalar_select %p117, %s118, %s119
      %p123 = pneg %p117
      %p124 = scmp.eq.s32.totalorder %s30, 1
      %p125 = por %p123, %p124
      %p126 = scmp.ne.s32.totalorder %s118, %s121
      %p127 = scmp.eq.s32.totalorder %s30, 0
      %p128 = por %p126, %p127
      %p129 = scmp.ne.s32.totalorder %s118, %s121
      %p130 = scmp.eq.s32.totalorder %s35, 1
      %p131 = por %p129, %p130
      %p132 = scmp.ne.s32.totalorder %s121, %s122
      %p133 = scmp.eq.s32.totalorder %s35, 0
      %p134 = por %p132, %p133
      %p135 = scmp.ne.s32.totalorder %s121, %s122
      %p136 = scmp.eq.s32.totalorder %s36, 1
      %p137 = por %p135, %p136
      %p139 = scmp.ne.s32.totalorder %s122, %s138
      %p140 = scmp.eq.s32.totalorder %s36, 0
      %p141 = por %p139, %p140
      %s143 = sadd.s32 %s142, 1
      %p146 = scmp.eq.s32.totalorder %s30, 1
      %p147 = scmp.ne.s32.totalorder %s142, %s144
      %p148 = scmp.eq.s32.totalorder %s30, 0
      %p149 = por %p147, %p148
      %p150 = scmp.ne.s32.totalorder %s142, %s144
      %p151 = scmp.eq.s32.totalorder %s35, 1
      %p152 = por %p150, %p151
      %p153 = scmp.ne.s32.totalorder %s144, %s145
      %p154 = scmp.eq.s32.totalorder %s35, 0
      %p155 = por %p153, %p154
      %p156 = scmp.ne.s32.totalorder %s144, %s145
      %p157 = scmp.eq.s32.totalorder %s36, 1
      %p158 = por %p156, %p157
      %p160 = scmp.ne.s32.totalorder %s145, %s159
      %p161 = scmp.eq.s32.totalorder %s36, 0
      %p162 = por %p160, %p161
      %s164 = sadd.s32 %s163, 1
      %p167 = scmp.eq.s32.totalorder %s30, 1
      %p168 = scmp.ne.s32.totalorder %s163, %s165
      %p169 = scmp.eq.s32.totalorder %s30, 0
      %p170 = por %p168, %p169
      %p171 = scmp.ne.s32.totalorder %s163, %s165
      %p172 = scmp.eq.s32.totalorder %s35, 1
      %p173 = por %p171, %p172
      %p174 = scmp.ne.s32.totalorder %s165, %s166
      %p175 = scmp.eq.s32.totalorder %s35, 0
      %p176 = por %p174, %p175
      %p177 = scmp.ne.s32.totalorder %s165, %s166
      %p178 = scmp.eq.s32.totalorder %s36, 1
      %p179 = por %p177, %p178
      %p181 = scmp.ne.s32.totalorder %s166, %s180
      %p182 = scmp.eq.s32.totalorder %s36, 0
      %p183 = por %p181, %p182
      %s185 = sadd.s32 %s184, 1
      %p188 = scmp.eq.s32.totalorder %s30, 1
      %p189 = scmp.ne.s32.totalorder %s184, %s186
      %p190 = scmp.eq.s32.totalorder %s30, 0
      %p191 = por %p189, %p190
      %p192 = scmp.ne.s32.totalorder %s184, %s186
      %p193 = scmp.eq.s32.totalorder %s35, 1
      %p194 = por %p192, %p193
      %p195 = scmp.ne.s32.totalorder %s186, %s187
      %p196 = scmp.eq.s32.totalorder %s35, 0
      %p197 = por %p195, %p196
      %p198 = scmp.ne.s32.totalorder %s186, %s187
      %p199 = scmp.eq.s32.totalorder %s36, 1
      %p200 = por %p198, %p199
      %p202 = scmp.ne.s32.totalorder %s187, %s201
      %p203 = scmp.eq.s32.totalorder %s36, 0
      %p204 = por %p202, %p203
      %s206 = sadd.s32 %s205, 1
      %p209 = scmp.eq.s32.totalorder %s30, 1
      %p210 = scmp.ne.s32.totalorder %s205, %s207
      %p211 = scmp.eq.s32.totalorder %s30, 0
      %p212 = por %p210, %p211
      %p213 = scmp.ne.s32.totalorder %s205, %s207
      %p214 = scmp.eq.s32.totalorder %s35, 1
      %p215 = por %p213, %p214
      %p216 = scmp.ne.s32.totalorder %s207, %s208
      %p217 = scmp.eq.s32.totalorder %s35, 0
      %p218 = por %p216, %p217
      %p219 = scmp.ne.s32.totalorder %s207, %s208
      %p220 = scmp.eq.s32.totalorder %s36, 1
      %p221 = por %p219, %p220
      %p223 = scmp.ne.s32.totalorder %s208, %s222
      %p224 = scmp.eq.s32.totalorder %s36, 0
      %p225 = por %p223, %p224
      %s227 = sadd.s32 %s226, 1
      %p230 = scmp.eq.s32.totalorder %s30, 1
      %p231 = scmp.ne.s32.totalorder %s226, %s228
      %p232 = scmp.eq.s32.totalorder %s30, 0
      %p233 = por %p231, %p232
      %p234 = scmp.ne.s32.totalorder %s226, %s228
      %p235 = scmp.eq.s32.totalorder %s35, 1
      %p236 = por %p234, %p235
      %p237 = scmp.ne.s32.totalorder %s228, %s229
      %p238 = scmp.eq.s32.totalorder %s35, 0
      %p239 = por %p237, %p238
      %p240 = scmp.ne.s32.totalorder %s228, %s229
      %p241 = scmp.eq.s32.totalorder %s36, 1
      %p242 = por %p240, %p241
      %p244 = scmp.ne.s32.totalorder %s229, %s243
      %p245 = scmp.eq.s32.totalorder %s36, 0
      %p246 = por %p244, %p245
      %s248 = sadd.s32 %s247, 1
      %p251 = scmp.eq.s32.totalorder %s30, 1
      %p252 = scmp.ne.s32.totalorder %s247, %s249
      %p253 = scmp.eq.s32.totalorder %s30, 0
      %p254 = por %p252, %p253
      %p255 = scmp.ne.s32.totalorder %s247, %s249
      %p256 = scmp.eq.s32.totalorder %s35, 1
      %p257 = por %p255, %p256
      %p258 = scmp.ne.s32.totalorder %s249, %s250
      %p259 = scmp.eq.s32.totalorder %s35, 0
      %p260 = por %p258, %p259
      %p261 = scmp.ne.s32.totalorder %s249, %s250
      %p262 = scmp.eq.s32.totalorder %s36, 1
      %p263 = por %p261, %p262
      %p265 = scmp.ne.s32.totalorder %s250, %s264
      %p266 = scmp.eq.s32.totalorder %s36, 0
      %p267 = por %p265, %p266
      %s269 = sadd.s32 %s268, 1
      %p272 = scmp.eq.s32.totalorder %s30, 1
      %p273 = scmp.ne.s32.totalorder %s268, %s270
      %p274 = scmp.eq.s32.totalorder %s30, 0
      %p275 = por %p273, %p274
      %p276 = scmp.ne.s32.totalorder %s268, %s270
      %p277 = scmp.eq.s32.totalorder %s35, 1
      %p278 = por %p276, %p277
      %p279 = scmp.ne.s32.totalorder %s270, %s271
      %p280 = scmp.eq.s32.totalorder %s35, 0
      %p281 = por %p279, %p280
      %p282 = scmp.ne.s32.totalorder %s270, %s271
      %p283 = scmp.eq.s32.totalorder %s36, 1
      %p284 = por %p282, %p283
      %p286 = scmp.ne.s32.totalorder %s271, %s285
      %p287 = scmp.eq.s32.totalorder %s36, 0
      %p288 = por %p286, %p287
      %s290 = sadd.s32 %s289, 1
      %p293 = scmp.eq.s32.totalorder %s30, 1
      %p294 = scmp.ne.s32.totalorder %s289, %s291
      %p295 = scmp.eq.s32.totalorder %s30, 0
      %p296 = por %p294, %p295
      %p297 = scmp.ne.s32.totalorder %s289, %s291
      %p298 = scmp.eq.s32.totalorder %s35, 1
      %p299 = por %p297, %p298
      %p300 = scmp.ne.s32.totalorder %s291, %s292
      %p301 = scmp.eq.s32.totalorder %s35, 0
      %p302 = por %p300, %p301
      %p303 = scmp.ne.s32.totalorder %s291, %s292
      %p304 = scmp.eq.s32.totalorder %s36, 1
      %p305 = por %p303, %p304
      %p307 = scmp.ne.s32.totalorder %s292, %s306
      %p308 = scmp.eq.s32.totalorder %s36, 0
      %p309 = por %p307, %p308
      %s311 = sadd.s32 %s310, 1
      %p314 = scmp.eq.s32.totalorder %s30, 1
      %p315 = scmp.ne.s32.totalorder %s310, %s312
      %p316 = scmp.eq.s32.totalorder %s30, 0
      %p317 = por %p315, %p316
      %p318 = scmp.ne.s32.totalorder %s310, %s312
      %p319 = scmp.eq.s32.totalorder %s35, 1
      %p320 = por %p318, %p319
      %p321 = scmp.ne.s32.totalorder %s312, %s313
      %p322 = scmp.eq.s32.totalorder %s35, 0
      %p323 = por %p321, %p322
      %p324 = scmp.ne.s32.totalorder %s312, %s313
      %p325 = scmp.eq.s32.totalorder %s36, 1
      %p326 = por %p324, %p325
      %p328 = scmp.ne.s32.totalorder %s313, %s327
      %p329 = scmp.eq.s32.totalorder %s36, 0
      %p330 = por %p328, %p329
      %s332 = sadd.s32 %s331, 1
      %p335 = scmp.eq.s32.totalorder %s30, 1
      %p336 = scmp.ne.s32.totalorder %s331, %s333
      %p337 = scmp.eq.s32.totalorder %s30, 0
      %p338 = por %p336, %p337
      %p339 = scmp.ne.s32.totalorder %s331, %s333
      %p340 = scmp.eq.s32.totalorder %s35, 1
      %p341 = por %p339, %p340
      %p342 = scmp.ne.s32.totalorder %s333, %s334
      %p343 = scmp.eq.s32.totalorder %s35, 0
      %p344 = por %p342, %p343
      %p345 = scmp.ne.s32.totalorder %s333, %s334
      %p346 = scmp.eq.s32.totalorder %s36, 1
      %p347 = por %p345, %p346
      %p349 = scmp.ne.s32.totalorder %s334, %s348
      %p350 = scmp.eq.s32.totalorder %s36, 0
      %p351 = por %p349, %p350
      %s353 = sadd.s32 %s352, 1
      %p356 = scmp.eq.s32.totalorder %s30, 1
      %p357 = scmp.ne.s32.totalorder %s352, %s354
      %p358 = scmp.eq.s32.totalorder %s30, 0
      %p359 = por %p357, %p358
      %p360 = scmp.ne.s32.totalorder %s352, %s354
      %p361 = scmp.eq.s32.totalorder %s35, 1
      %p362 = por %p360, %p361
      %p363 = scmp.ne.s32.totalorder %s354, %s355
      %p364 = scmp.eq.s32.totalorder %s35, 0
      %p365 = por %p363, %p364
      %p366 = scmp.ne.s32.totalorder %s354, %s355
      %p367 = scmp.eq.s32.totalorder %s36, 1
      %p368 = por %p366, %p367
      %p370 = scmp.ne.s32.totalorder %s355, %s369
      %p371 = scmp.eq.s32.totalorder %s36, 0
      %p372 = por %p370, %p371
      %s374 = sadd.s32 %s373, 1
      %p377 = scmp.eq.s32.totalorder %s30, 1
      %p378 = scmp.ne.s32.totalorder %s373, %s375
      %p379 = scmp.eq.s32.totalorder %s30, 0
      %p380 = por %p378, %p379
      %p381 = scmp.ne.s32.totalorder %s373, %s375
      %p382 = scmp.eq.s32.totalorder %s35, 1
      %p383 = por %p381, %p382
      %p384 = scmp.ne.s32.totalorder %s375, %s376
      %p385 = scmp.eq.s32.totalorder %s35, 0
      %p386 = por %p384, %p385
      %p387 = scmp.ne.s32.totalorder %s375, %s376
      %p388 = scmp.eq.s32.totalorder %s36, 1
      %p389 = por %p387, %p388
      %p391 = scmp.ne.s32.totalorder %s376, %s390
      %p392 = scmp.eq.s32.totalorder %s36, 0
      %p393 = por %p391, %p392
      %s395 = sadd.s32 %s394, 1
      %p398 = scmp.eq.s32.totalorder %s30, 1
      %p399 = scmp.ne.s32.totalorder %s394, %s396
      %p400 = scmp.eq.s32.totalorder %s30, 0
      %p401 = por %p399, %p400
      %p402 = scmp.ne.s32.totalorder %s394, %s396
      %p403 = scmp.eq.s32.totalorder %s35, 1
      %p404 = por %p402, %p403
      %p405 = scmp.ne.s32.totalorder %s396, %s397
      %p406 = scmp.eq.s32.totalorder %s35, 0
      %p407 = por %p405, %p406
      %p408 = scmp.ne.s32.totalorder %s396, %s397
      %p409 = scmp.eq.s32.totalorder %s36, 1
      %p410 = por %p408, %p409
      %p412 = scmp.ne.s32.totalorder %s397, %s411
      %p413 = scmp.eq.s32.totalorder %s36, 0
      %p414 = por %p412, %p413
      %s415 = ssub.s32 %s30, %s37
      %p416 = scmp.eq.s32.totalorder %s415, 0
      %s418 = sadd.s32 %s417, 1
      %s419 = scalar_select %p416, %s417, %s418
      %p422 = pneg %p416
      %p423 = scmp.eq.s32.totalorder %s30, 1
      %p424 = por %p422, %p423
      %p425 = scmp.ne.s32.totalorder %s417, %s420
      %p426 = scmp.eq.s32.totalorder %s30, 0
      %p427 = por %p425, %p426
      %p428 = scmp.ne.s32.totalorder %s417, %s420
      %p429 = scmp.eq.s32.totalorder %s35, 1
      %p430 = por %p428, %p429
      %p431 = scmp.ne.s32.totalorder %s420, %s421
      %p432 = scmp.eq.s32.totalorder %s35, 0
      %p433 = por %p431, %p432
      %p434 = scmp.ne.s32.totalorder %s420, %s421
      %p435 = scmp.eq.s32.totalorder %s36, 1
      %p436 = por %p434, %p435
      %p438 = scmp.ne.s32.totalorder %s421, %s437
      %p439 = scmp.eq.s32.totalorder %s36, 0
      %p440 = por %p438, %p439
      %p441 = scmp.le.s32.totalorder 1, %s30
      %p442 = scmp.lt.s32.totalorder %s30, 3
      %p443 = pnand %p441, %p442
      %p444 = pneg %p443
      // Predicated region
      $region9: #{tpu_custom_call.1} parent=5 // pred_check
        _
      $region10: #{tpu_custom_call.1} parent=5 // pred_check_branch
        %446 = sbr.rel (%p443) target = $region12
      $region11: #{tpu_custom_call.1} parent=5 // pred_region
        %s447 = ssub.s32 %s30, 1
        // Predicated region
        $region13: #{tpu_custom_call.1} parent=11 // pred_check
          %p448 = pneg %p155
        $region14: #{tpu_custom_call.1} parent=11 // pred_check_branch
          %450 = sbr.rel (%p448) target = $region16
        $region15: #{tpu_custom_call.1} parent=11 // pred_region
          _
        $region16: #{tpu_custom_call.1} parent=11 // pred_fallthru
          _
        // Predicated region
        $region17: #{tpu_custom_call.1} parent=11 // pred_check
          %p451 = pneg %p176
        $region18: #{tpu_custom_call.1} parent=11 // pred_check_branch
          %453 = sbr.rel (%p451) target = $region20
        $region19: #{tpu_custom_call.1} parent=11 // pred_region
          _
        $region20: #{tpu_custom_call.1} parent=11 // pred_fallthru
          _
        // Predicated region
        $region21: #{tpu_custom_call.1} parent=11 // pred_check
          %p454 = pneg %p197
        $region22: #{tpu_custom_call.1} parent=11 // pred_check_branch
          %456 = sbr.rel (%p454) target = $region24
        $region23: #{tpu_custom_call.1} parent=11 // pred_region
          %s458 = ssub.s32 2048, 2048
          %459 = vsyncadd [#allocation3], %s458
          %s460 = sshll.u32 [#allocation2], 4
          %s461 = int_to_ptr.vmem [resolvable:$true] %s460
          %466 = dma.hbm_to_vmem [thread:$0]  %s6, 2048, %s461, [#allocation3], 128, 128, 8
        $region24: #{tpu_custom_call.1} parent=11 // pred_fallthru
          _
        // Predicated region
        $region25: #{tpu_custom_call.1} parent=11 // pred_check
          %p467 = pneg %p218
        $region26: #{tpu_custom_call.1} parent=11 // pred_check_branch
          %469 = sbr.rel (%p467) target = $region28
        $region27: #{tpu_custom_call.1} parent=11 // pred_region
          %s471 = ssub.s32 2048, 2048
          %472 = vsyncadd [#allocation6], %s471
          %s473 = sshll.u32 [#allocation5], 4
          %s474 = int_to_ptr.vmem [resolvable:$true] %s473
          %479 = dma.hbm_to_vmem [thread:$0]  %s7, 2048, %s474, [#allocation6], 128, 128, 8
        $region28: #{tpu_custom_call.1} parent=11 // pred_fallthru
          _
        // Predicated region
        $region29: #{tpu_custom_call.1} parent=11 // pred_check
          %p480 = pneg %p239
        $region30: #{tpu_custom_call.1} parent=11 // pred_check_branch
          %482 = sbr.rel (%p480) target = $region32
        $region31: #{tpu_custom_call.1} parent=11 // pred_region
          _
        $region32: #{tpu_custom_call.1} parent=11 // pred_fallthru
          _
        // Predicated region
        $region33: #{tpu_custom_call.1} parent=11 // pred_check
          %p483 = pneg %p260
        $region34: #{tpu_custom_call.1} parent=11 // pred_check_branch
          %485 = sbr.rel (%p483) target = $region36
        $region35: #{tpu_custom_call.1} parent=11 // pred_region
          %s487 = ssub.s32 2048, 2048
          %488 = vsyncadd [#allocation6], %s487
          %s489 = sshll.u32 [#allocation7], 4
          %s490 = int_to_ptr.vmem [resolvable:$true] %s489
          %495 = dma.hbm_to_vmem [thread:$0]  %s9, 2048, %s490, [#allocation6], 128, 128, 8
        $region36: #{tpu_custom_call.1} parent=11 // pred_fallthru
          _
        // Predicated region
        $region37: #{tpu_custom_call.1} parent=11 // pred_check
          %p496 = pneg %p281
        $region38: #{tpu_custom_call.1} parent=11 // pred_check_branch
          %498 = sbr.rel (%p496) target = $region40
        $region39: #{tpu_custom_call.1} parent=11 // pred_region
          _
        $region40: #{tpu_custom_call.1} parent=11 // pred_fallthru
          _
        // Predicated region
        $region41: #{tpu_custom_call.1} parent=11 // pred_check
          %p499 = pneg %p302
        $region42: #{tpu_custom_call.1} parent=11 // pred_check_branch
          %501 = sbr.rel (%p499) target = $region44
        $region43: #{tpu_custom_call.1} parent=11 // pred_region
          %s503 = ssub.s32 2048, 2048
          %504 = vsyncadd [#allocation9], %s503
          %s505 = sshll.u32 [#allocation8], 4
          %s506 = int_to_ptr.vmem [resolvable:$true] %s505
          %511 = dma.hbm_to_vmem [thread:$0]  %s11, 2048, %s506, [#allocation9], 64, 64, 4
        $region44: #{tpu_custom_call.1} parent=11 // pred_fallthru
          _
        // Predicated region
        $region45: #{tpu_custom_call.1} parent=11 // pred_check
          %p512 = pneg %p323
        $region46: #{tpu_custom_call.1} parent=11 // pred_check_branch
          %514 = sbr.rel (%p512) target = $region48
        $region47: #{tpu_custom_call.1} parent=11 // pred_region
          _
        $region48: #{tpu_custom_call.1} parent=11 // pred_fallthru
          _
        // Predicated region
        $region49: #{tpu_custom_call.1} parent=11 // pred_check
          %p515 = pneg %p344
        $region50: #{tpu_custom_call.1} parent=11 // pred_check_branch
          %517 = sbr.rel (%p515) target = $region52
        $region51: #{tpu_custom_call.1} parent=11 // pred_region
          %s519 = ssub.s32 3072, 3072
          %520 = vsyncadd [#allocation9], %s519
          %s521 = sshll.u32 [#allocation10], 4
          %s522 = int_to_ptr.vmem [resolvable:$true] %s521
          %527 = dma.hbm_to_vmem [thread:$0]  %s13, 3072, %s522, [#allocation9], 192, 192, 12
        $region52: #{tpu_custom_call.1} parent=11 // pred_fallthru
          _
        // Predicated region
        $region53: #{tpu_custom_call.1} parent=11 // pred_check
          %p528 = pneg %p365
        $region54: #{tpu_custom_call.1} parent=11 // pred_check_branch
          %530 = sbr.rel (%p528) target = $region56
        $region55: #{tpu_custom_call.1} parent=11 // pred_region
          _
        $region56: #{tpu_custom_call.1} parent=11 // pred_fallthru
          _
        // Predicated region
        $region57: #{tpu_custom_call.1} parent=11 // pred_check
          %p531 = pneg %p386
        $region58: #{tpu_custom_call.1} parent=11 // pred_check_branch
          %533 = sbr.rel (%p531) target = $region60
        $region59: #{tpu_custom_call.1} parent=11 // pred_region
          %s535 = ssub.s32 3072, 3072
          %536 = vsyncadd [#allocation12], %s535
          %s537 = sshll.u32 [#allocation11], 4
          %s538 = int_to_ptr.vmem [resolvable:$true] %s537
          %543 = dma.hbm_to_vmem [thread:$0]  %s15, 3072, %s538, [#allocation12], 192, 192, 12
        $region60: #{tpu_custom_call.1} parent=11 // pred_fallthru
          _
        // Predicated region
        $region61: #{tpu_custom_call.1} parent=11 // pred_check
          %p544 = pneg %p407
        $region62: #{tpu_custom_call.1} parent=11 // pred_check_branch
          %546 = sbr.rel (%p544) target = $region64
        $region63: #{tpu_custom_call.1} parent=11 // pred_region
          _
        $region64: #{tpu_custom_call.1} parent=11 // pred_fallthru
          _
      $region12: #{tpu_custom_call.1} parent=5 // pred_fallthru
        _
      %p547 = scmp.lt.s32.totalorder %s30, 2
      // Predicated region
      $region65: #{tpu_custom_call.1} parent=5 // pred_check
        %p548 = pneg %p547
      $region66: #{tpu_custom_call.1} parent=5 // pred_check_branch
        %550 = sbr.rel (%p548) target = $region68
      $region67: #{tpu_custom_call.1} parent=5 // pred_region
        // Predicated region
        $region69: #{tpu_custom_call.1} parent=67 // pred_check
          %p551 = pneg %p50
        $region70: #{tpu_custom_call.1} parent=67 // pred_check_branch
          %553 = sbr.rel (%p551) target = $region72
        $region71: #{tpu_custom_call.1} parent=67 // pred_region
          %s554 = smul.u32 2, %s30
          %p555 = scmp.lt.s32.totalorder %s554, 3
          %s556 = scalar_select %p555, %s554, 3
          %s557 = smul.addr %s556, 8
          %s558 = scalar_lea.vmem %s0, %s557
          %s559 = smul.u32 2, %s30
        $region72: #{tpu_custom_call.1} parent=67 // pred_fallthru
          _
        // Predicated region
        $region73: #{tpu_custom_call.1} parent=67 // pred_check
          %p560 = pneg %p76
        $region74: #{tpu_custom_call.1} parent=67 // pred_check_branch
          %562 = sbr.rel (%p560) target = $region76
        $region75: #{tpu_custom_call.1} parent=67 // pred_region
          %s563 = smul.u32 2, %s30
          %p564 = scmp.lt.s32.totalorder %s563, 3
          %s565 = scalar_select %p564, %s563, 3
          %s566 = smul.addr %s565, 4
          %s567 = scalar_lea.vmem %s1, %s566
          %s568 = smul.u32 2, %s30
        $region76: #{tpu_custom_call.1} parent=67 // pred_fallthru
          _
        // Predicated region
        $region77: #{tpu_custom_call.1} parent=67 // pred_check
          %p569 = pneg %p102
        $region78: #{tpu_custom_call.1} parent=67 // pred_check_branch
          %571 = sbr.rel (%p569) target = $region80
        $region79: #{tpu_custom_call.1} parent=67 // pred_region
          %s572 = smul.u32 2, %s30
          %p573 = scmp.lt.s32.totalorder %s572, 3
          %s574 = scalar_select %p573, %s572, 3
          %s575 = smul.addr %s574, 8
          %s576 = scalar_lea.vmem %s2, %s575
          %s577 = smul.u32 2, %s30
        $region80: #{tpu_custom_call.1} parent=67 // pred_fallthru
          _
        // Predicated region
        $region81: #{tpu_custom_call.1} parent=67 // pred_check
          %p578 = pneg %p128
        $region82: #{tpu_custom_call.1} parent=67 // pred_check_branch
          %580 = sbr.rel (%p578) target = $region84
        $region83: #{tpu_custom_call.1} parent=67 // pred_region
          %s581 = smul.u32 2, %s30
          %p582 = scmp.lt.s32.totalorder %s581, 3
          %s583 = scalar_select %p582, %s581, 3
          %s584 = smul.addr %s583, 8
          %s585 = scalar_lea.vmem %s3, %s584
          %s586 = smul.u32 2, %s30
        $region84: #{tpu_custom_call.1} parent=67 // pred_fallthru
          _
      $region68: #{tpu_custom_call.1} parent=5 // pred_fallthru
        _
      %p587 = scmp.le.s32.totalorder 1, %s30
      %p588 = scmp.lt.s32.totalorder %s30, 3
      %p589 = pnand %p587, %p588
      %p590 = pneg %p589
      // Predicated region
      $region85: #{tpu_custom_call.1} parent=5 // pred_check
        _
      $region86: #{tpu_custom_call.1} parent=5 // pred_check_branch
        %592 = sbr.rel (%p589) target = $region88
      $region87: #{tpu_custom_call.1} parent=5 // pred_region
        %s593 = ssub.s32 %s30, 1
        // Predicated region
        $region89: #{tpu_custom_call.1} parent=87 // pred_check
          %p594 = pneg %p197
        $region90: #{tpu_custom_call.1} parent=87 // pred_check_branch
          %596 = sbr.rel (%p594) target = $region92
        $region91: #{tpu_custom_call.1} parent=87 // pred_region
          %597 = dma.done [#allocation3], 2048
        $region92: #{tpu_custom_call.1} parent=87 // pred_fallthru
          _
        // Predicated region
        $region93: #{tpu_custom_call.1} parent=87 // pred_check
          %p598 = pneg %p218
        $region94: #{tpu_custom_call.1} parent=87 // pred_check_branch
          %600 = sbr.rel (%p598) target = $region96
        $region95: #{tpu_custom_call.1} parent=87 // pred_region
          %601 = dma.done [#allocation6], 2048
        $region96: #{tpu_custom_call.1} parent=87 // pred_fallthru
          _
        // Predicated region
        $region97: #{tpu_custom_call.1} parent=87 // pred_check
          %p602 = pneg %p260
        $region98: #{tpu_custom_call.1} parent=87 // pred_check_branch
          %604 = sbr.rel (%p602) target = $region100
        $region99: #{tpu_custom_call.1} parent=87 // pred_region
          %605 = dma.done [#allocation6], 2048
        $region100: #{tpu_custom_call.1} parent=87 // pred_fallthru
          _
        // Predicated region
        $region101: #{tpu_custom_call.1} parent=87 // pred_check
          %p606 = pneg %p302
        $region102: #{tpu_custom_call.1} parent=87 // pred_check_branch
          %608 = sbr.rel (%p606) target = $region104
        $region103: #{tpu_custom_call.1} parent=87 // pred_region
          %609 = dma.done [#allocation9], 2048
        $region104: #{tpu_custom_call.1} parent=87 // pred_fallthru
          _
        // Predicated region
        $region105: #{tpu_custom_call.1} parent=87 // pred_check
          %p610 = pneg %p344
        $region106: #{tpu_custom_call.1} parent=87 // pred_check_branch
          %612 = sbr.rel (%p610) target = $region108
        $region107: #{tpu_custom_call.1} parent=87 // pred_region
          %613 = dma.done [#allocation9], 3072
        $region108: #{tpu_custom_call.1} parent=87 // pred_fallthru
          _
        // Predicated region
        $region109: #{tpu_custom_call.1} parent=87 // pred_check
          %p614 = pneg %p386
        $region110: #{tpu_custom_call.1} parent=87 // pred_check_branch
          %616 = sbr.rel (%p614) target = $region112
        $region111: #{tpu_custom_call.1} parent=87 // pred_region
          %617 = dma.done [#allocation12], 3072
        $region112: #{tpu_custom_call.1} parent=87 // pred_fallthru
          _
        %s618 = smul.u32 2, %s35
        %p619 = scmp.lt.s32.totalorder %s618, 3
        %s620 = scalar_select %p619, %s618, 3
        %s621 = smul.addr %s620, 8
        %s622 = scalar_lea.vmem %s0, %s621
        %p623 = pneg %p56
        %p624 = pneg %p53
        %s625 = smul.u32 2, %s35
        %p626 = scmp.lt.s32.totalorder %s625, 3
        %s627 = scalar_select %p626, %s625, 3
        %s628 = smul.addr %s627, 4
        %s629 = scalar_lea.vmem %s1, %s628
        %p630 = pneg %p82
        %p631 = pneg %p79
        %s632 = smul.u32 2, %s35
        %p633 = scmp.lt.s32.totalorder %s632, 3
        %s634 = scalar_select %p633, %s632, 3
        %s635 = smul.addr %s634, 8
        %s636 = scalar_lea.vmem %s2, %s635
        %p637 = pneg %p108
        %p638 = pneg %p105
        %s639 = smul.u32 2, %s35
        %p640 = scmp.lt.s32.totalorder %s639, 3
        %s641 = scalar_select %p640, %s639, 3
        %s642 = smul.addr %s641, 8
        %s643 = scalar_lea.vmem %s3, %s642
        %p644 = pneg %p134
        %p645 = pneg %p131
        %p646 = pneg %p155
        %p647 = pneg %p152
        %p648 = pneg %p176
        %p649 = pneg %p173
        %p650 = pneg %p197
        %p651 = pneg %p194
        %p652 = pneg %p218
        %p653 = pneg %p215
        %p654 = pneg %p239
        %p655 = pneg %p236
        %p656 = pneg %p260
        %p657 = pneg %p257
        %p658 = pneg %p281
        %p659 = pneg %p278
        %p660 = pneg %p302
        %p661 = pneg %p299
        %p662 = pneg %p323
        %p663 = pneg %p320
        %p664 = pneg %p344
        %p665 = pneg %p341
        %p666 = pneg %p365
        %p667 = pneg %p362
        %p668 = pneg %p386
        %p669 = pneg %p383
        %p670 = pneg %p407
        %p671 = pneg %p404
        %p672 = pneg %p433
        %p673 = pneg %p430
        %s674 = sand.u32 %s420, 1
        %s675 = scalar_lea.sflag [#allocation4], %s674
        %s676 = sand.u32 %s420, 1
        %s677 = smul.addr %s676, 16
        %s678 = scalar_lea.vmem [#allocation13], %s677
        %s679 = smul.u32 2, %s35
        %p680 = scmp.lt.s32.totalorder %s679, 3
        %s681 = scalar_select %p680, %s679, 3
        %s682 = smul.addr %s681, 8
        %s683 = scalar_lea.vmem %s0, %s682
        %s684 = smul.u32 2, %s35
        %s685 = smul.u32 2, %s35
        %p686 = scmp.lt.s32.totalorder %s685, 3
        %s687 = scalar_select %p686, %s685, 3
        %s688 = smul.addr %s687, 4
        %s689 = scalar_lea.vmem %s1, %s688
        %s690 = smul.u32 2, %s35
        %s691 = smul.u32 2, %s35
        %p692 = scmp.lt.s32.totalorder %s691, 3
        %s693 = scalar_select %p692, %s691, 3
        %s694 = smul.addr %s693, 8
        %s695 = scalar_lea.vmem %s2, %s694
        %s696 = smul.u32 2, %s35
        %s697 = smul.u32 2, %s35
        %p698 = scmp.lt.s32.totalorder %s697, 3
        %s699 = scalar_select %p698, %s697, 3
        %s700 = smul.addr %s699, 8
        %s701 = scalar_lea.vmem %s3, %s700
        %s702 = smul.u32 2, %s35
        %s703 = smul.u32 2, %s35
        %v705 = vld [vmem:[%s683] sm:$0xff]
        %v706 = vld [vmem:[%s683 + $0x8] sm:$0xff]
        %v707 = vpack.c.bf16 %v706, %v705
        %v708 = vld [vmem:[%s695] sm:$0xff]
        %v709 = vld [vmem:[%s695 + $0x8] sm:$0xff]
        %v710 = vld [vmem:[%s701] sm:$0xff]
        %v711 = vld [vmem:[%s701 + $0x8] sm:$0xff]
        %v712 = vld [vmem:[%s4] sm:$0x1]
        %714 = vset.pattern.permute.xlu0 0
        %715 = vperm.xlu0 %714, %v710
        %v716 = vpop.permute.xlu0 %715
        %719 = vset.pattern.permute.xlu0 0
        %720 = vperm.xlu0 %719, %v711
        %v721 = vpop.permute.xlu0 %720
        %v724 = vlaneseq
        %v725 = vshrl.u32 %v724, 7
        %v726 = vsub.s32 0, %v725
        %v727 = vrot.slane %v712, %v726
        %v729 = vmul.f32 %v716, %v727
        %v730 = vmul.f32 %v721, %v727
        %v731 = vld [vmem:[%s5] sm:$0x1]
        %v733 = vlaneseq
        %v734 = vshrl.u32 %v733, 7
        %v735 = vsub.s32 0, %v734
        %v736 = vrot.slane %v731, %v735
        %v738 = vadd.f32 %v729, %v736
        %v739 = vadd.f32 %v730, %v736
        %v740 = vand.u32 2147483647, %v738
        %vm741 = vcmp.le.f32.partialorder %v740, 0.7853982
        %vm742 = vcmp.lt.s32.totalorder %v738, 0
        %v743 = vand.u32 %v738, 2139095040
        %v744 = vshrl.u32 %v743, 23
        %v745 = vsub.s32 %v744, 127
        %v746 = vand.u32 2147483647, %v738
        %v747 = vand.u32 %v746, 8388607
        %v748 = vor.u32 %v747, 8388608
        %v749 = vsub.s32 0, %v748
        %v750 = vadd.s32 %v745, 1
        %vm751 = vcmp.gt.s32.totalorder %v750, 0
        %v752 = vsel %vm751, %v750, 0
        %v753 = vshrl.u32 %v752, 5
        %v754 = vand.u32 %v752, 31
        %v755 = vsub.s32 32, %v754
        %v756 = vshrl.u32 683565275, %v755
        %v757 = vshll.u32 683565275, %v754
        %v758 = vshrl.u32 2475754826, %v755
        %v759 = vor.u32 %v757, %v758
        %v760 = vshll.u32 2475754826, %v754
        %v761 = vshrl.u32 2131351028, %v755
        %v762 = vor.u32 %v760, %v761
        %v763 = vshll.u32 2131351028, %v754
        %v764 = vshrl.u32 2102212464, %v755
        %v765 = vor.u32 %v763, %v764
        %v766 = vshll.u32 2102212464, %v754
        %v767 = vshrl.u32 920167782, %v755
        %v768 = vor.u32 %v766, %v767
        %v769 = vshll.u32 920167782, %v754
        %v770 = vshrl.u32 1326507024, %v755
        %v771 = vor.u32 %v769, %v770
        %vm772 = vcmp.lt.s32.totalorder %v753, 1
        %vm773 = vcmp.lt.s32.totalorder %v753, 2
        %vm774 = vcmp.lt.s32.totalorder %v753, 3
        %vm775 = vcmp.lt.s32.totalorder %v753, 4
        %v776 = vsel %vm772, %v756, %v759
        %v777 = vsel %vm775, %v765, 2102212464
        %v778 = vsel %vm774, %v762, %v777
        %v779 = vsel %vm773, %v776, %v778
        %v780 = vsel %vm772, %v759, %v762
        %v781 = vsel %vm775, %v768, 920167782
        %v782 = vsel %vm774, %v765, %v781
        %v783 = vsel %vm773, %v780, %v782
        %v784 = vsel %vm772, %v762, %v765
        %v785 = vsel %vm775, %v771, 1326507024
        %v786 = vsel %vm774, %v768, %v785
        %v787 = vsel %vm773, %v784, %v786
        %v788 = vshll.u32 %v748, 8
        %v789 = vmul.u32.u64.compose %v788, %v787
        %v790 = vextract.low.u32 %v789
        %v791 = vextract.high.u32 %v789
        %v792 = vmul.u32.u64.compose %v788, %v783
        %v793 = vextract.low.u32 %v792
        %v794 = vextract.high.u32 %v792
        %v795 = vmul.u32 %v788, %v779
        %v796 = vadd.s32 %v791, %v793
        %vm797 = vc.u32 %v791, %v793
        %v798 = vadd.s32 %v794, 1
        %v799 = vsel %vm797, %v798, %v794
        %v800 = vadd.s32 %v795, %v799
        %v801 = vadd.s32 %v800, 536870912
        %v802 = vshrl.u32 %v801, 30
        %v803 = vshll.u32 %v802, 30
        %v804 = vsub.s32 %v800, %v803
        %vm805 = vcmp.lt.s32.totalorder %v804, 0
        %v806 = vsub.s32 0, %v804
        %v807 = vsel %vm805, %v806, %v804
        %v808 = vclz %v807
        %v809 = vsub.s32 %v808, 2
        %vm810 = vcmp.gt.s32.totalorder 0, %v809
        %v811 = vsel %vm810, 0, %v809
        %v812 = vsub.s32 32, %v811
        %v813 = vshll.u32 %v804, %v811
        %v814 = vshrl.u32 %v796, %v812
        %v815 = vor.u32 %v813, %v814
        %v816 = vsub.s32 4294967266, %v811
        %v817 = vadd.s32 %v816, 127
        %v818 = vshll.u32 %v817, 23
        %v819 = vor.u32 4788187, %v818
        %v820 = vand.u32 2147483647, %v819
        %v822 = vcvt.s32.f32 %v815
        %v823 = vmul.f32 %v822, %v820
        %v824 = vxor.u32 %v823, 2147483648
        %v825 = vsel %vm742, %v824, %v823
        %v826 = vsub.s32 4, %v802
        %v827 = vsel %vm742, %v826, %v802
        %v828 = vsel %vm741, %v738, %v825
        %v829 = vsel %vm741, 0, %v827
        %v830 = vcosq.f32.pop %v828
        %v831 = vsinq.f32.pop %v828
        %vm832 = vweird.f32 %v738
        %v833 = vand.u32 %v829, 3
        %vm834 = vcmp.lt.s32.totalorder %v833, 2
        %vm835 = vcmp.eq.s32.totalorder %v833, 0
        %v836 = vxor.u32 %v831, 2147483648
        %v837 = vsel %vm835, %v830, %v836
        %vm838 = vcmp.eq.s32.totalorder %v833, 2
        %v839 = vxor.u32 %v830, 2147483648
        %v840 = vsel %vm838, %v839, %v831
        %v841 = vsel %vm834, %v837, %v840
        %v842 = vsel %vm832, nan, %v841
        %v843 = vand.u32 2147483647, %v739
        %vm844 = vcmp.le.f32.partialorder %v843, 0.7853982
        %vm845 = vcmp.lt.s32.totalorder %v739, 0
        %v846 = vand.u32 %v739, 2139095040
        %v847 = vshrl.u32 %v846, 23
        %v848 = vsub.s32 %v847, 127
        %v849 = vand.u32 2147483647, %v739
        %v850 = vand.u32 %v849, 8388607
        %v851 = vor.u32 %v850, 8388608
        %v852 = vsub.s32 0, %v851
        %v853 = vadd.s32 %v848, 1
        %vm854 = vcmp.gt.s32.totalorder %v853, 0
        %v855 = vsel %vm854, %v853, 0
        %v856 = vshrl.u32 %v855, 5
        %v857 = vand.u32 %v855, 31
        %v858 = vsub.s32 32, %v857
        %v859 = vshrl.u32 683565275, %v858
        %v860 = vshll.u32 683565275, %v857
        %v861 = vshrl.u32 2475754826, %v858
        %v862 = vor.u32 %v860, %v861
        %v863 = vshll.u32 2475754826, %v857
        %v864 = vshrl.u32 2131351028, %v858
        %v865 = vor.u32 %v863, %v864
        %v866 = vshll.u32 2131351028, %v857
        %v867 = vshrl.u32 2102212464, %v858
        %v868 = vor.u32 %v866, %v867
        %v869 = vshll.u32 2102212464, %v857
        %v870 = vshrl.u32 920167782, %v858
        %v871 = vor.u32 %v869, %v870
        %v872 = vshll.u32 920167782, %v857
        %v873 = vshrl.u32 1326507024, %v858
        %v874 = vor.u32 %v872, %v873
        %vm875 = vcmp.lt.s32.totalorder %v856, 1
        %vm876 = vcmp.lt.s32.totalorder %v856, 2
        %vm877 = vcmp.lt.s32.totalorder %v856, 3
        %vm878 = vcmp.lt.s32.totalorder %v856, 4
        %v879 = vsel %vm875, %v859, %v862
        %v880 = vsel %vm878, %v868, 2102212464
        %v881 = vsel %vm877, %v865, %v880
        %v882 = vsel %vm876, %v879, %v881
        %v883 = vsel %vm875, %v862, %v865
        %v884 = vsel %vm878, %v871, 920167782
        %v885 = vsel %vm877, %v868, %v884
        %v886 = vsel %vm876, %v883, %v885
        %v887 = vsel %vm875, %v865, %v868
        %v888 = vsel %vm878, %v874, 1326507024
        %v889 = vsel %vm877, %v871, %v888
        %v890 = vsel %vm876, %v887, %v889
        %v891 = vshll.u32 %v851, 8
        %v892 = vmul.u32.u64.compose %v891, %v890
        %v893 = vextract.low.u32 %v892
        %v894 = vextract.high.u32 %v892
        %v895 = vmul.u32.u64.compose %v891, %v886
        %v896 = vextract.low.u32 %v895
        %v897 = vextract.high.u32 %v895
        %v898 = vmul.u32 %v891, %v882
        %v899 = vadd.s32 %v894, %v896
        %vm900 = vc.u32 %v894, %v896
        %v901 = vadd.s32 %v897, 1
        %v902 = vsel %vm900, %v901, %v897
        %v903 = vadd.s32 %v898, %v902
        %v904 = vadd.s32 %v903, 536870912
        %v905 = vshrl.u32 %v904, 30
        %v906 = vshll.u32 %v905, 30
        %v907 = vsub.s32 %v903, %v906
        %vm908 = vcmp.lt.s32.totalorder %v907, 0
        %v909 = vsub.s32 0, %v907
        %v910 = vsel %vm908, %v909, %v907
        %v911 = vclz %v910
        %v912 = vsub.s32 %v911, 2
        %vm913 = vcmp.gt.s32.totalorder 0, %v912
        %v914 = vsel %vm913, 0, %v912
        %v915 = vsub.s32 32, %v914
        %v916 = vshll.u32 %v907, %v914
        %v917 = vshrl.u32 %v899, %v915
        %v918 = vor.u32 %v916, %v917
        %v919 = vsub.s32 4294967266, %v914
        %v920 = vadd.s32 %v919, 127
        %v921 = vshll.u32 %v920, 23
        %v922 = vor.u32 4788187, %v921
        %v923 = vand.u32 2147483647, %v922
        %v925 = vcvt.s32.f32 %v918
        %v926 = vmul.f32 %v925, %v923
        %v927 = vxor.u32 %v926, 2147483648
        %v928 = vsel %vm845, %v927, %v926
        %v929 = vsub.s32 4, %v905
        %v930 = vsel %vm845, %v929, %v905
        %v931 = vsel %vm844, %v739, %v928
        %v932 = vsel %vm844, 0, %v930
        %v933 = vcosq.f32.pop %v931
        %v934 = vsinq.f32.pop %v931
        %vm935 = vweird.f32 %v739
        %v936 = vand.u32 %v932, 3
        %vm937 = vcmp.lt.s32.totalorder %v936, 2
        %vm938 = vcmp.eq.s32.totalorder %v936, 0
        %v939 = vxor.u32 %v934, 2147483648
        %v940 = vsel %vm938, %v933, %v939
        %vm941 = vcmp.eq.s32.totalorder %v936, 2
        %v942 = vxor.u32 %v933, 2147483648
        %v943 = vsel %vm941, %v942, %v934
        %v944 = vsel %vm937, %v940, %v943
        %v945 = vsel %vm935, nan, %v944
        %v946 = vld [vmem:[#allocation2] sm:$0xff]
        %v947 = vld [vmem:[#allocation2 + $0x8] sm:$0xff]
        %v948 = vld [vmem:[#allocation2 + $0x10] sm:$0xff]
        %v949 = vld [vmem:[#allocation2 + $0x18] sm:$0xff]
        %v950 = vld [vmem:[#allocation2 + $0x20] sm:$0xff]
        %v951 = vld [vmem:[#allocation2 + $0x28] sm:$0xff]
        %v952 = vld [vmem:[#allocation2 + $0x30] sm:$0xff]
        %v953 = vld [vmem:[#allocation2 + $0x38] sm:$0xff]
        %v954 = vld [vmem:[#allocation2 + $0x40] sm:$0xff]
        %v955 = vld [vmem:[#allocation2 + $0x48] sm:$0xff]
        %v956 = vld [vmem:[#allocation2 + $0x50] sm:$0xff]
        %v957 = vld [vmem:[#allocation2 + $0x58] sm:$0xff]
        %v958 = vld [vmem:[#allocation2 + $0x60] sm:$0xff]
        %v959 = vld [vmem:[#allocation2 + $0x68] sm:$0xff]
        %v960 = vld [vmem:[#allocation2 + $0x70] sm:$0xff]
        %v961 = vld [vmem:[#allocation2 + $0x78] sm:$0xff]
        %v962 = vld [vmem:[%s689] sm:$0xf]
        %v963 = vld [vmem:[%s689 + $0x4] sm:$0xf]
        %v964 = vld [vmem:[#allocation5] sm:$0xff]
        %v965 = vld [vmem:[#allocation5 + $0x8] sm:$0xff]
        %v966 = vld [vmem:[#allocation5 + $0x10] sm:$0xff]
        %v967 = vld [vmem:[#allocation5 + $0x18] sm:$0xff]
        %v968 = vld [vmem:[#allocation5 + $0x20] sm:$0xff]
        %v969 = vld [vmem:[#allocation5 + $0x28] sm:$0xff]
        %v970 = vld [vmem:[#allocation5 + $0x30] sm:$0xff]
        %v971 = vld [vmem:[#allocation5 + $0x38] sm:$0xff]
        %v972 = vld [vmem:[#allocation5 + $0x40] sm:$0xff]
        %v973 = vld [vmem:[#allocation5 + $0x48] sm:$0xff]
        %v974 = vld [vmem:[#allocation5 + $0x50] sm:$0xff]
        %v975 = vld [vmem:[#allocation5 + $0x58] sm:$0xff]
        %v976 = vld [vmem:[#allocation5 + $0x60] sm:$0xff]
        %v977 = vld [vmem:[#allocation5 + $0x68] sm:$0xff]
        %v978 = vld [vmem:[#allocation5 + $0x70] sm:$0xff]
        %v979 = vld [vmem:[#allocation5 + $0x78] sm:$0xff]
        %v982 = vunpack.c.l.b16 %v962
        %v983 = vunpack.c.l.b16 %v963
        %v984 = vpack.c.b16 %v983, %v982
        %v1002 = vunpack.c.l.b16 %v964
        %v1003 = vunpack.c.h.b16 %v964
        %v1004 = vunpack.c.l.b16 %v965
        %v1005 = vunpack.c.h.b16 %v965
        %v1006 = vunpack.c.l.b16 %v966
        %v1007 = vunpack.c.h.b16 %v966
        %v1008 = vunpack.c.l.b16 %v967
        %v1009 = vunpack.c.h.b16 %v967
        %v1010 = vunpack.c.l.b16 %v968
        %v1011 = vunpack.c.h.b16 %v968
        %v1012 = vunpack.c.l.b16 %v969
        %v1013 = vunpack.c.h.b16 %v969
        %v1014 = vunpack.c.l.b16 %v970
        %v1015 = vunpack.c.h.b16 %v970
        %v1016 = vunpack.c.l.b16 %v971
        %v1017 = vunpack.c.h.b16 %v971
        %v1018 = vunpack.c.l.b16 %v972
        %v1019 = vunpack.c.h.b16 %v972
        %v1020 = vunpack.c.l.b16 %v973
        %v1021 = vunpack.c.h.b16 %v973
        %v1022 = vunpack.c.l.b16 %v974
        %v1023 = vunpack.c.h.b16 %v974
        %v1024 = vunpack.c.l.b16 %v975
        %v1025 = vunpack.c.h.b16 %v975
        %v1026 = vunpack.c.l.b16 %v976
        %v1027 = vunpack.c.h.b16 %v976
        %v1028 = vunpack.c.l.b16 %v977
        %v1029 = vunpack.c.h.b16 %v977
        %v1030 = vunpack.c.l.b16 %v978
        %v1031 = vunpack.c.h.b16 %v978
        %v1032 = vunpack.c.l.b16 %v979
        %v1033 = vunpack.c.h.b16 %v979
        %v1034 = vpack.c.b16 %v1004, %v1002
        %v1035 = vpack.c.b16 %v1005, %v1003
        %v1036 = vpack.c.b16 %v1008, %v1006
        %v1037 = vpack.c.b16 %v1009, %v1007
        %v1038 = vpack.c.b16 %v1012, %v1010
        %v1039 = vpack.c.b16 %v1013, %v1011
        %v1040 = vpack.c.b16 %v1016, %v1014
        %v1041 = vpack.c.b16 %v1017, %v1015
        %v1042 = vpack.c.b16 %v1020, %v1018
        %v1043 = vpack.c.b16 %v1021, %v1019
        %v1044 = vpack.c.b16 %v1024, %v1022
        %v1045 = vpack.c.b16 %v1025, %v1023
        %v1046 = vpack.c.b16 %v1028, %v1026
        %v1047 = vpack.c.b16 %v1029, %v1027
        %v1048 = vpack.c.b16 %v1032, %v1030
        %v1049 = vpack.c.b16 %v1033, %v1031
        %1066 = vmatprep.subr.bf16.mxu0 %v1035
        %1067 = vmatpush1.bf16.msra.mxu0 %v1034
        %1068 = vmatprep.subr.bf16.mxu0 %v1037
        %1069 = vmatpush1.bf16.msra.mxu0 %v1036
        %1070 = vmatprep.subr.bf16.mxu0 %v1039
        %1071 = vmatpush1.bf16.msra.mxu0 %v1038
        %1072 = vmatprep.subr.bf16.mxu0 %v1041
        %1073 = vmatpush1.bf16.msra.mxu0 %v1040
        %1074 = vmatprep.subr.bf16.mxu0 %v1043
        %1075 = vmatpush1.bf16.msra.mxu0 %v1042
        %1076 = vmatprep.subr.bf16.mxu0 %v1045
        %1077 = vmatpush1.bf16.msra.mxu0 %v1044
        %1078 = vmatprep.subr.bf16.mxu0 %v1047
        %1079 = vmatpush1.bf16.msra.mxu0 %v1046
        %1080 = vmatprep.subr.bf16.mxu0 %v1049
        %1081 = vmatpush1.bf16.msra.mxu0 %v1048
        %1082 = vmatprep.subr.bf16.mxu0 0
        %1083 = vmatpush1.bf16.msra.mxu0 0
        %1084 = vmatprep.subr.bf16.mxu0 0
        %1085 = vmatpush1.bf16.msra.mxu0 0
        %1086 = vmatprep.subr.bf16.mxu0 0
        %1087 = vmatpush1.bf16.msra.mxu0 0
        %1088 = vmatprep.subr.bf16.mxu0 0
        %1089 = vmatpush1.bf16.msra.mxu0 0
        %1090 = vmatprep.subr.bf16.mxu0 0
        %1091 = vmatpush1.bf16.msra.mxu0 0
        %1092 = vmatprep.subr.bf16.mxu0 0
        %1093 = vmatpush1.bf16.msra.mxu0 0
        %1094 = vmatprep.subr.bf16.mxu0 0
        %1095 = vmatpush1.bf16.msra.mxu0 0
        %1096 = vmatprep.subr.bf16.mxu0 0
        %1097 = vmatpush1.bf16.msra.mxu0 0
        %1098 = vmatprep.mubr.bf16.mxu0 0
        %1099 = vmatmul.mubr.bf16.gmra.mrb[0].mxu0 %v984
        %v1100 = vpop.f32.mrb[0].mxu0
        %v1101 = vadd.f32 0.0, %v1100
        %v1102 = vpop.f32.mrb[0].mxu0
        %v1103 = vadd.f32 0.0, %v1102
        %v1104 = vpop.f32.mrb[0].mxu0
        %v1105 = vadd.f32 0.0, %v1104
        %v1106 = vpop.f32.mrb[0].mxu0
        %v1107 = vadd.f32 0.0, %v1106
        %1108 = vdwg.mxu0
        %v1125 = vunpack.c.l.b16 %v946
        %v1126 = vunpack.c.h.b16 %v946
        %v1127 = vunpack.c.l.b16 %v947
        %v1128 = vunpack.c.h.b16 %v947
        %v1129 = vunpack.c.l.b16 %v948
        %v1130 = vunpack.c.h.b16 %v948
        %v1131 = vunpack.c.l.b16 %v949
        %v1132 = vunpack.c.h.b16 %v949
        %v1133 = vunpack.c.l.b16 %v950
        %v1134 = vunpack.c.h.b16 %v950
        %v1135 = vunpack.c.l.b16 %v951
        %v1136 = vunpack.c.h.b16 %v951
        %v1137 = vunpack.c.l.b16 %v952
        %v1138 = vunpack.c.h.b16 %v952
        %v1139 = vunpack.c.l.b16 %v953
        %v1140 = vunpack.c.h.b16 %v953
        %v1141 = vunpack.c.l.b16 %v954
        %v1142 = vunpack.c.h.b16 %v954
        %v1143 = vunpack.c.l.b16 %v955
        %v1144 = vunpack.c.h.b16 %v955
        %v1145 = vunpack.c.l.b16 %v956
        %v1146 = vunpack.c.h.b16 %v956
        %v1147 = vunpack.c.l.b16 %v957
        %v1148 = vunpack.c.h.b16 %v957
        %v1149 = vunpack.c.l.b16 %v958
        %v1150 = vunpack.c.h.b16 %v958
        %v1151 = vunpack.c.l.b16 %v959
        %v1152 = vunpack.c.h.b16 %v959
        %v1153 = vunpack.c.l.b16 %v960
        %v1154 = vunpack.c.h.b16 %v960
        %v1155 = vunpack.c.l.b16 %v961
        %v1156 = vunpack.c.h.b16 %v961
        %v1157 = vpack.c.b16 %v1127, %v1125
        %v1158 = vpack.c.b16 %v1128, %v1126
        %v1159 = vpack.c.b16 %v1131, %v1129
        %v1160 = vpack.c.b16 %v1132, %v1130
        %v1161 = vpack.c.b16 %v1135, %v1133
        %v1162 = vpack.c.b16 %v1136, %v1134
        %v1163 = vpack.c.b16 %v1139, %v1137
        %v1164 = vpack.c.b16 %v1140, %v1138
        %v1165 = vpack.c.b16 %v1143, %v1141
        %v1166 = vpack.c.b16 %v1144, %v1142
        %v1167 = vpack.c.b16 %v1147, %v1145
        %v1168 = vpack.c.b16 %v1148, %v1146
        %v1169 = vpack.c.b16 %v1151, %v1149
        %v1170 = vpack.c.b16 %v1152, %v1150
        %v1171 = vpack.c.b16 %v1155, %v1153
        %v1172 = vpack.c.b16 %v1156, %v1154
        %1189 = vmatprep.subr.bf16.mxu0 %v1158
        %1190 = vmatpush1.bf16.msra.mxu0 %v1157
        %1191 = vmatprep.subr.bf16.mxu0 %v1160
        %1192 = vmatpush1.bf16.msra.mxu0 %v1159
        %1193 = vmatprep.subr.bf16.mxu0 %v1162
        %1194 = vmatpush1.bf16.msra.mxu0 %v1161
        %1195 = vmatprep.subr.bf16.mxu0 %v1164
        %1196 = vmatpush1.bf16.msra.mxu0 %v1163
        %1197 = vmatprep.subr.bf16.mxu0 %v1166
        %1198 = vmatpush1.bf16.msra.mxu0 %v1165
        %1199 = vmatprep.subr.bf16.mxu0 %v1168
        %1200 = vmatpush1.bf16.msra.mxu0 %v1167
        %1201 = vmatprep.subr.bf16.mxu0 %v1170
        %1202 = vmatpush1.bf16.msra.mxu0 %v1169
        %1203 = vmatprep.subr.bf16.mxu0 %v1172
        %1204 = vmatpush1.bf16.msra.mxu0 %v1171
        %1205 = vmatprep.subr.bf16.mxu0 0
        %1206 = vmatpush1.bf16.msra.mxu0 0
        %1207 = vmatprep.subr.bf16.mxu0 0
        %1208 = vmatpush1.bf16.msra.mxu0 0
        %1209 = vmatprep.subr.bf16.mxu0 0
        %1210 = vmatpush1.bf16.msra.mxu0 0
        %1211 = vmatprep.subr.bf16.mxu0 0
        %1212 = vmatpush1.bf16.msra.mxu0 0
        %1213 = vmatprep.subr.bf16.mxu0 0
        %1214 = vmatpush1.bf16.msra.mxu0 0
        %1215 = vmatprep.subr.bf16.mxu0 0
        %1216 = vmatpush1.bf16.msra.mxu0 0
        %1217 = vmatprep.subr.bf16.mxu0 0
        %1218 = vmatpush1.bf16.msra.mxu0 0
        %1219 = vmatprep.subr.bf16.mxu0 0
        %1220 = vmatpush1.bf16.msra.mxu0 0
        %1221 = vmatprep.mubr.bf16.mxu0 0
        %1222 = vmatmul.mubr.bf16.gmra.mrb[0].mxu0 %v707
        %v1223 = vpop.f32.mrb[0].mxu0
        %v1224 = vadd.f32 %v1101, %v1223
        %v1225 = vpop.f32.mrb[0].mxu0
        %v1226 = vadd.f32 %v1103, %v1225
        %v1227 = vpop.f32.mrb[0].mxu0
        %v1228 = vadd.f32 %v1105, %v1227
        %v1229 = vpop.f32.mrb[0].mxu0
        %v1230 = vadd.f32 %v1107, %v1229
        %1231 = vdwg.mxu0
        %v1232 = vld [vmem:[%s8] sm:$0x3]
        %1234 = vset.pattern.permute.xlu0 0
        %1235 = vperm.xlu0 %1234, %v708
        %v1236 = vpop.permute.xlu0 %1235
        %1239 = vset.pattern.permute.xlu0 0
        %1240 = vperm.xlu0 %1239, %v709
        %v1241 = vpop.permute.xlu0 %1240
        %v1244 = vlaneseq
        %v1245 = vshrl.u32 %v1244, 7
        %v1246 = vsub.s32 0, %v1245
        %v1247 = vrot.slane %v1232, %v1246
        %v1248 = vlaneseq
        %v1249 = vshrl.u32 %v1248, 7
        %v1250 = vsub.s32 1, %v1249
        %v1251 = vrot.slane %v1232, %v1250
        %v1254 = vmul.f32 %v1236, %v1247
        %v1255 = vmul.f32 %v1236, %v1251
        %v1256 = vmul.f32 %v1241, %v1247
        %v1257 = vmul.f32 %v1241, %v1251
        %v1258 = vadd.f32 %v1224, %v1254
        %v1259 = vadd.f32 %v1226, %v1255
        %v1260 = vadd.f32 %v1228, %v1256
        %v1261 = vadd.f32 %v1230, %v1257
        %v1262 = vld [vmem:[#allocation7] sm:$0xff]
        %v1263 = vld [vmem:[#allocation7 + $0x8] sm:$0xff]
        %v1264 = vld [vmem:[#allocation7 + $0x10] sm:$0xff]
        %v1265 = vld [vmem:[#allocation7 + $0x18] sm:$0xff]
        %v1266 = vld [vmem:[#allocation7 + $0x20] sm:$0xff]
        %v1267 = vld [vmem:[#allocation7 + $0x28] sm:$0xff]
        %v1268 = vld [vmem:[#allocation7 + $0x30] sm:$0xff]
        %v1269 = vld [vmem:[#allocation7 + $0x38] sm:$0xff]
        %v1270 = vld [vmem:[#allocation7 + $0x40] sm:$0xff]
        %v1271 = vld [vmem:[#allocation7 + $0x48] sm:$0xff]
        %v1272 = vld [vmem:[#allocation7 + $0x50] sm:$0xff]
        %v1273 = vld [vmem:[#allocation7 + $0x58] sm:$0xff]
        %v1274 = vld [vmem:[#allocation7 + $0x60] sm:$0xff]
        %v1275 = vld [vmem:[#allocation7 + $0x68] sm:$0xff]
        %v1276 = vld [vmem:[#allocation7 + $0x70] sm:$0xff]
        %v1277 = vld [vmem:[#allocation7 + $0x78] sm:$0xff]
        %v1278 = vpack.c.bf16 %v945, %v842
        %v1295 = vunpack.c.l.b16 %v1262
        %v1296 = vunpack.c.h.b16 %v1262
        %v1297 = vunpack.c.l.b16 %v1263
        %v1298 = vunpack.c.h.b16 %v1263
        %v1299 = vunpack.c.l.b16 %v1264
        %v1300 = vunpack.c.h.b16 %v1264
        %v1301 = vunpack.c.l.b16 %v1265
        %v1302 = vunpack.c.h.b16 %v1265
        %v1303 = vunpack.c.l.b16 %v1266
        %v1304 = vunpack.c.h.b16 %v1266
        %v1305 = vunpack.c.l.b16 %v1267
        %v1306 = vunpack.c.h.b16 %v1267
        %v1307 = vunpack.c.l.b16 %v1268
        %v1308 = vunpack.c.h.b16 %v1268
        %v1309 = vunpack.c.l.b16 %v1269
        %v1310 = vunpack.c.h.b16 %v1269
        %v1311 = vunpack.c.l.b16 %v1270
        %v1312 = vunpack.c.h.b16 %v1270
        %v1313 = vunpack.c.l.b16 %v1271
        %v1314 = vunpack.c.h.b16 %v1271
        %v1315 = vunpack.c.l.b16 %v1272
        %v1316 = vunpack.c.h.b16 %v1272
        %v1317 = vunpack.c.l.b16 %v1273
        %v1318 = vunpack.c.h.b16 %v1273
        %v1319 = vunpack.c.l.b16 %v1274
        %v1320 = vunpack.c.h.b16 %v1274
        %v1321 = vunpack.c.l.b16 %v1275
        %v1322 = vunpack.c.h.b16 %v1275
        %v1323 = vunpack.c.l.b16 %v1276
        %v1324 = vunpack.c.h.b16 %v1276
        %v1325 = vunpack.c.l.b16 %v1277
        %v1326 = vunpack.c.h.b16 %v1277
        %v1327 = vpack.c.b16 %v1297, %v1295
        %v1328 = vpack.c.b16 %v1298, %v1296
        %v1329 = vpack.c.b16 %v1301, %v1299
        %v1330 = vpack.c.b16 %v1302, %v1300
        %v1331 = vpack.c.b16 %v1305, %v1303
        %v1332 = vpack.c.b16 %v1306, %v1304
        %v1333 = vpack.c.b16 %v1309, %v1307
        %v1334 = vpack.c.b16 %v1310, %v1308
        %v1335 = vpack.c.b16 %v1313, %v1311
        %v1336 = vpack.c.b16 %v1314, %v1312
        %v1337 = vpack.c.b16 %v1317, %v1315
        %v1338 = vpack.c.b16 %v1318, %v1316
        %v1339 = vpack.c.b16 %v1321, %v1319
        %v1340 = vpack.c.b16 %v1322, %v1320
        %v1341 = vpack.c.b16 %v1325, %v1323
        %v1342 = vpack.c.b16 %v1326, %v1324
        %1359 = vmatprep.subr.bf16.mxu0 %v1328
        %1360 = vmatpush1.bf16.msra.mxu0 %v1327
        %1361 = vmatprep.subr.bf16.mxu0 %v1330
        %1362 = vmatpush1.bf16.msra.mxu0 %v1329
        %1363 = vmatprep.subr.bf16.mxu0 %v1332
        %1364 = vmatpush1.bf16.msra.mxu0 %v1331
        %1365 = vmatprep.subr.bf16.mxu0 %v1334
        %1366 = vmatpush1.bf16.msra.mxu0 %v1333
        %1367 = vmatprep.subr.bf16.mxu0 %v1336
        %1368 = vmatpush1.bf16.msra.mxu0 %v1335
        %1369 = vmatprep.subr.bf16.mxu0 %v1338
        %1370 = vmatpush1.bf16.msra.mxu0 %v1337
        %1371 = vmatprep.subr.bf16.mxu0 %v1340
        %1372 = vmatpush1.bf16.msra.mxu0 %v1339
        %1373 = vmatprep.subr.bf16.mxu0 %v1342
        %1374 = vmatpush1.bf16.msra.mxu0 %v1341
        %1375 = vmatprep.subr.bf16.mxu0 0
        %1376 = vmatpush1.bf16.msra.mxu0 0
        %1377 = vmatprep.subr.bf16.mxu0 0
        %1378 = vmatpush1.bf16.msra.mxu0 0
        %1379 = vmatprep.subr.bf16.mxu0 0
        %1380 = vmatpush1.bf16.msra.mxu0 0
        %1381 = vmatprep.subr.bf16.mxu0 0
        %1382 = vmatpush1.bf16.msra.mxu0 0
        %1383 = vmatprep.subr.bf16.mxu0 0
        %1384 = vmatpush1.bf16.msra.mxu0 0
        %1385 = vmatprep.subr.bf16.mxu0 0
        %1386 = vmatpush1.bf16.msra.mxu0 0
        %1387 = vmatprep.subr.bf16.mxu0 0
        %1388 = vmatpush1.bf16.msra.mxu0 0
        %1389 = vmatprep.subr.bf16.mxu0 0
        %1390 = vmatpush1.bf16.msra.mxu0 0
        %1391 = vmatprep.mubr.bf16.mxu0 0
        %1392 = vmatmul.mubr.bf16.gmra.mrb[0].mxu0 %v1278
        %v1393 = vpop.f32.mrb[0].mxu0
        %v1394 = vadd.f32 0.0, %v1393
        %v1395 = vpop.f32.mrb[0].mxu0
        %v1396 = vadd.f32 0.0, %v1395
        %v1397 = vpop.f32.mrb[0].mxu0
        %v1398 = vadd.f32 0.0, %v1397
        %v1399 = vpop.f32.mrb[0].mxu0
        %v1400 = vadd.f32 0.0, %v1399
        %1401 = vdwg.mxu0
        %v1402 = vadd.f32 %v1258, %v1394
        %v1403 = vadd.f32 %v1259, %v1396
        %v1404 = vadd.f32 %v1260, %v1398
        %v1405 = vadd.f32 %v1261, %v1400
        %v1406 = vld [vmem:[%s10] sm:$0x3]
        %v1408 = vlaneseq
        %v1409 = vshrl.u32 %v1408, 7
        %v1410 = vsub.s32 0, %v1409
        %v1411 = vrot.slane %v1406, %v1410
        %v1412 = vlaneseq
        %v1413 = vshrl.u32 %v1412, 7
        %v1414 = vsub.s32 1, %v1413
        %v1415 = vrot.slane %v1406, %v1414
        %v1418 = vadd.f32 %v1402, %v1411
        %v1419 = vadd.f32 %v1403, %v1415
        %v1420 = vadd.f32 %v1404, %v1411
        %v1421 = vadd.f32 %v1405, %v1415
        %v1422 = vmax.f32 %v1418, 0.0
        %v1423 = vmax.f32 %v1419, 0.0
        %v1424 = vmax.f32 %v1420, 0.0
        %v1425 = vmax.f32 %v1421, 0.0
        %v1426 = vld [vmem:[#allocation8] sm:$0xf]
        %v1427 = vld [vmem:[#allocation8 + $0x4] sm:$0xf]
        %v1428 = vld [vmem:[#allocation8 + $0x8] sm:$0xf]
        %v1429 = vld [vmem:[#allocation8 + $0xc] sm:$0xf]
        %v1430 = vld [vmem:[#allocation8 + $0x10] sm:$0xf]
        %v1431 = vld [vmem:[#allocation8 + $0x14] sm:$0xf]
        %v1432 = vld [vmem:[#allocation8 + $0x18] sm:$0xf]
        %v1433 = vld [vmem:[#allocation8 + $0x1c] sm:$0xf]
        %v1434 = vld [vmem:[#allocation8 + $0x20] sm:$0xf]
        %v1435 = vld [vmem:[#allocation8 + $0x24] sm:$0xf]
        %v1436 = vld [vmem:[#allocation8 + $0x28] sm:$0xf]
        %v1437 = vld [vmem:[#allocation8 + $0x2c] sm:$0xf]
        %v1438 = vld [vmem:[#allocation8 + $0x30] sm:$0xf]
        %v1439 = vld [vmem:[#allocation8 + $0x34] sm:$0xf]
        %v1440 = vld [vmem:[#allocation8 + $0x38] sm:$0xf]
        %v1441 = vld [vmem:[#allocation8 + $0x3c] sm:$0xf]
        %v1442 = vld [vmem:[#allocation8 + $0x40] sm:$0xf]
        %v1443 = vld [vmem:[#allocation8 + $0x44] sm:$0xf]
        %v1444 = vld [vmem:[#allocation8 + $0x48] sm:$0xf]
        %v1445 = vld [vmem:[#allocation8 + $0x4c] sm:$0xf]
        %v1446 = vld [vmem:[#allocation8 + $0x50] sm:$0xf]
        %v1447 = vld [vmem:[#allocation8 + $0x54] sm:$0xf]
        %v1448 = vld [vmem:[#allocation8 + $0x58] sm:$0xf]
        %v1449 = vld [vmem:[#allocation8 + $0x5c] sm:$0xf]
        %v1450 = vld [vmem:[#allocation8 + $0x60] sm:$0xf]
        %v1451 = vld [vmem:[#allocation8 + $0x64] sm:$0xf]
        %v1452 = vld [vmem:[#allocation8 + $0x68] sm:$0xf]
        %v1453 = vld [vmem:[#allocation8 + $0x6c] sm:$0xf]
        %v1454 = vld [vmem:[#allocation8 + $0x70] sm:$0xf]
        %v1455 = vld [vmem:[#allocation8 + $0x74] sm:$0xf]
        %v1456 = vld [vmem:[#allocation8 + $0x78] sm:$0xf]
        %v1457 = vld [vmem:[#allocation8 + $0x7c] sm:$0xf]
        %v1458 = vpack.c.bf16 %v1424, %v1422
        %v1459 = vpack.c.bf16 %v1425, %v1423
        %v1460 = vld [vmem:[%s12] sm:$0x1]
        %v1462 = vlaneseq
        %v1463 = vshrl.u32 %v1462, 7
        %v1464 = vsub.s32 0, %v1463
        %v1465 = vrot.slane %v1460, %v1464
        %v1499 = vunpack.c.l.b16 %v1426
        %v1500 = vunpack.c.l.b16 %v1427
        %v1501 = vunpack.c.l.b16 %v1428
        %v1502 = vunpack.c.l.b16 %v1429
        %v1503 = vunpack.c.l.b16 %v1430
        %v1504 = vunpack.c.l.b16 %v1431
        %v1505 = vunpack.c.l.b16 %v1432
        %v1506 = vunpack.c.l.b16 %v1433
        %v1507 = vunpack.c.l.b16 %v1434
        %v1508 = vunpack.c.l.b16 %v1435
        %v1509 = vunpack.c.l.b16 %v1436
        %v1510 = vunpack.c.l.b16 %v1437
        %v1511 = vunpack.c.l.b16 %v1438
        %v1512 = vunpack.c.l.b16 %v1439
        %v1513 = vunpack.c.l.b16 %v1440
        %v1514 = vunpack.c.l.b16 %v1441
        %v1515 = vunpack.c.l.b16 %v1442
        %v1516 = vunpack.c.l.b16 %v1443
        %v1517 = vunpack.c.l.b16 %v1444
        %v1518 = vunpack.c.l.b16 %v1445
        %v1519 = vunpack.c.l.b16 %v1446
        %v1520 = vunpack.c.l.b16 %v1447
        %v1521 = vunpack.c.l.b16 %v1448
        %v1522 = vunpack.c.l.b16 %v1449
        %v1523 = vunpack.c.l.b16 %v1450
        %v1524 = vunpack.c.l.b16 %v1451
        %v1525 = vunpack.c.l.b16 %v1452
        %v1526 = vunpack.c.l.b16 %v1453
        %v1527 = vunpack.c.l.b16 %v1454
        %v1528 = vunpack.c.l.b16 %v1455
        %v1529 = vunpack.c.l.b16 %v1456
        %v1530 = vunpack.c.l.b16 %v1457
        %v1531 = vpack.c.b16 %v1500, %v1499
        %v1532 = vpack.c.b16 %v1502, %v1501
        %v1533 = vpack.c.b16 %v1504, %v1503
        %v1534 = vpack.c.b16 %v1506, %v1505
        %v1535 = vpack.c.b16 %v1508, %v1507
        %v1536 = vpack.c.b16 %v1510, %v1509
        %v1537 = vpack.c.b16 %v1512, %v1511
        %v1538 = vpack.c.b16 %v1514, %v1513
        %v1539 = vpack.c.b16 %v1516, %v1515
        %v1540 = vpack.c.b16 %v1518, %v1517
        %v1541 = vpack.c.b16 %v1520, %v1519
        %v1542 = vpack.c.b16 %v1522, %v1521
        %v1543 = vpack.c.b16 %v1524, %v1523
        %v1544 = vpack.c.b16 %v1526, %v1525
        %v1545 = vpack.c.b16 %v1528, %v1527
        %v1546 = vpack.c.b16 %v1530, %v1529
        %1563 = vmatprep.subr.bf16.mxu0 0
        %1564 = vmatpush1.bf16.msra.mxu0 %v1531
        %1565 = vmatprep.subr.bf16.mxu0 0
        %1566 = vmatpush1.bf16.msra.mxu0 %v1532
        %1567 = vmatprep.subr.bf16.mxu0 0
        %1568 = vmatpush1.bf16.msra.mxu0 %v1533
        %1569 = vmatprep.subr.bf16.mxu0 0
        %1570 = vmatpush1.bf16.msra.mxu0 %v1534
        %1571 = vmatprep.subr.bf16.mxu0 0
        %1572 = vmatpush1.bf16.msra.mxu0 %v1535
        %1573 = vmatprep.subr.bf16.mxu0 0
        %1574 = vmatpush1.bf16.msra.mxu0 %v1536
        %1575 = vmatprep.subr.bf16.mxu0 0
        %1576 = vmatpush1.bf16.msra.mxu0 %v1537
        %1577 = vmatprep.subr.bf16.mxu0 0
        %1578 = vmatpush1.bf16.msra.mxu0 %v1538
        %1579 = vmatprep.subr.bf16.mxu0 0
        %1580 = vmatpush1.bf16.msra.mxu0 %v1539
        %1581 = vmatprep.subr.bf16.mxu0 0
        %1582 = vmatpush1.bf16.msra.mxu0 %v1540
        %1583 = vmatprep.subr.bf16.mxu0 0
        %1584 = vmatpush1.bf16.msra.mxu0 %v1541
        %1585 = vmatprep.subr.bf16.mxu0 0
        %1586 = vmatpush1.bf16.msra.mxu0 %v1542
        %1587 = vmatprep.subr.bf16.mxu0 0
        %1588 = vmatpush1.bf16.msra.mxu0 %v1543
        %1589 = vmatprep.subr.bf16.mxu0 0
        %1590 = vmatpush1.bf16.msra.mxu0 %v1544
        %1591 = vmatprep.subr.bf16.mxu0 0
        %1592 = vmatpush1.bf16.msra.mxu0 %v1545
        %1593 = vmatprep.subr.bf16.mxu0 0
        %1594 = vmatpush1.bf16.msra.mxu0 %v1546
        %1595 = vmatprep.mubr.bf16.mxu0 %v1459
        %1596 = vmatmul.mubr.bf16.gmra.mrb[0].mxu0 %v1458
        %v1597 = vpop.f32.mrb[0].mxu0
        %v1598 = vadd.f32 %v1465, %v1597
        %v1599 = vpop.f32.mrb[0].mxu0
        %v1600 = vpop.f32.mrb[0].mxu0
        %v1601 = vadd.f32 %v1465, %v1600
        %v1602 = vpop.f32.mrb[0].mxu0
        %1603 = vdwg.mxu0
        %v1604 = vld [vmem:[#allocation10] sm:$0xff]
        %v1605 = vld [vmem:[#allocation10 + $0x8] sm:$0xf]
        %v1606 = vld [vmem:[#allocation10 + $0xc] sm:$0xff]
        %v1607 = vld [vmem:[#allocation10 + $0x14] sm:$0xf]
        %v1608 = vld [vmem:[#allocation10 + $0x18] sm:$0xff]
        %v1609 = vld [vmem:[#allocation10 + $0x20] sm:$0xf]
        %v1610 = vld [vmem:[#allocation10 + $0x24] sm:$0xff]
        %v1611 = vld [vmem:[#allocation10 + $0x2c] sm:$0xf]
        %v1612 = vld [vmem:[#allocation10 + $0x30] sm:$0xff]
        %v1613 = vld [vmem:[#allocation10 + $0x38] sm:$0xf]
        %v1614 = vld [vmem:[#allocation10 + $0x3c] sm:$0xff]
        %v1615 = vld [vmem:[#allocation10 + $0x44] sm:$0xf]
        %v1616 = vld [vmem:[#allocation10 + $0x48] sm:$0xff]
        %v1617 = vld [vmem:[#allocation10 + $0x50] sm:$0xf]
        %v1618 = vld [vmem:[#allocation10 + $0x54] sm:$0xff]
        %v1619 = vld [vmem:[#allocation10 + $0x5c] sm:$0xf]
        %v1620 = vld [vmem:[#allocation10 + $0x60] sm:$0xff]
        %v1621 = vld [vmem:[#allocation10 + $0x68] sm:$0xf]
        %v1622 = vld [vmem:[#allocation10 + $0x6c] sm:$0xff]
        %v1623 = vld [vmem:[#allocation10 + $0x74] sm:$0xf]
        %v1624 = vld [vmem:[#allocation10 + $0x78] sm:$0xff]
        %v1625 = vld [vmem:[#allocation10 + $0x80] sm:$0xf]
        %v1626 = vld [vmem:[#allocation10 + $0x84] sm:$0xff]
        %v1627 = vld [vmem:[#allocation10 + $0x8c] sm:$0xf]
        %v1628 = vld [vmem:[#allocation10 + $0x90] sm:$0xff]
        %v1629 = vld [vmem:[#allocation10 + $0x98] sm:$0xf]
        %v1630 = vld [vmem:[#allocation10 + $0x9c] sm:$0xff]
        %v1631 = vld [vmem:[#allocation10 + $0xa4] sm:$0xf]
        %v1632 = vld [vmem:[#allocation10 + $0xa8] sm:$0xff]
        %v1633 = vld [vmem:[#allocation10 + $0xb0] sm:$0xf]
        %v1634 = vld [vmem:[#allocation10 + $0xb4] sm:$0xff]
        %v1635 = vld [vmem:[#allocation10 + $0xbc] sm:$0xf]
        %v1636 = vpack.c.bf16 %v1601, %v1598
        %v1637 = vld [vmem:[%s14] sm:$0x7]
        %v1639 = vlaneseq
        %v1640 = vshrl.u32 %v1639, 7
        %v1641 = vsub.s32 0, %v1640
        %v1642 = vrot.slane %v1637, %v1641
        %v1643 = vlaneseq
        %v1644 = vshrl.u32 %v1643, 7
        %v1645 = vsub.s32 1, %v1644
        %v1646 = vrot.slane %v1637, %v1645
        %v1647 = vlaneseq
        %v1648 = vshrl.u32 %v1647, 7
        %v1649 = vsub.s32 2, %v1648
        %v1650 = vrot.slane %v1637, %v1649
        %v1686 = vunpack.c.l.b16 %v1604
        %v1687 = vunpack.c.h.b16 %v1604
        %v1688 = vunpack.c.l.b16 %v1605
        %v1689 = vunpack.c.l.b16 %v1606
        %v1690 = vunpack.c.h.b16 %v1606
        %v1691 = vunpack.c.l.b16 %v1607
        %v1692 = vunpack.c.l.b16 %v1608
        %v1693 = vunpack.c.h.b16 %v1608
        %v1694 = vunpack.c.l.b16 %v1609
        %v1695 = vunpack.c.l.b16 %v1610
        %v1696 = vunpack.c.h.b16 %v1610
        %v1697 = vunpack.c.l.b16 %v1611
        %v1698 = vunpack.c.l.b16 %v1612
        %v1699 = vunpack.c.h.b16 %v1612
        %v1700 = vunpack.c.l.b16 %v1613
        %v1701 = vunpack.c.l.b16 %v1614
        %v1702 = vunpack.c.h.b16 %v1614
        %v1703 = vunpack.c.l.b16 %v1615
        %v1704 = vunpack.c.l.b16 %v1616
        %v1705 = vunpack.c.h.b16 %v1616
        %v1706 = vunpack.c.l.b16 %v1617
        %v1707 = vunpack.c.l.b16 %v1618
        %v1708 = vunpack.c.h.b16 %v1618
        %v1709 = vunpack.c.l.b16 %v1619
        %v1710 = vunpack.c.l.b16 %v1620
        %v1711 = vunpack.c.h.b16 %v1620
        %v1712 = vunpack.c.l.b16 %v1621
        %v1713 = vunpack.c.l.b16 %v1622
        %v1714 = vunpack.c.h.b16 %v1622
        %v1715 = vunpack.c.l.b16 %v1623
        %v1716 = vunpack.c.l.b16 %v1624
        %v1717 = vunpack.c.h.b16 %v1624
        %v1718 = vunpack.c.l.b16 %v1625
        %v1719 = vunpack.c.l.b16 %v1626
        %v1720 = vunpack.c.h.b16 %v1626
        %v1721 = vunpack.c.l.b16 %v1627
        %v1722 = vunpack.c.l.b16 %v1628
        %v1723 = vunpack.c.h.b16 %v1628
        %v1724 = vunpack.c.l.b16 %v1629
        %v1725 = vunpack.c.l.b16 %v1630
        %v1726 = vunpack.c.h.b16 %v1630
        %v1727 = vunpack.c.l.b16 %v1631
        %v1728 = vunpack.c.l.b16 %v1632
        %v1729 = vunpack.c.h.b16 %v1632
        %v1730 = vunpack.c.l.b16 %v1633
        %v1731 = vunpack.c.l.b16 %v1634
        %v1732 = vunpack.c.h.b16 %v1634
        %v1733 = vunpack.c.l.b16 %v1635
        %v1734 = vpack.c.b16 %v1689, %v1686
        %v1735 = vpack.c.b16 %v1690, %v1687
        %v1736 = vpack.c.b16 %v1691, %v1688
        %v1737 = vpack.c.b16 %v1695, %v1692
        %v1738 = vpack.c.b16 %v1696, %v1693
        %v1739 = vpack.c.b16 %v1697, %v1694
        %v1740 = vpack.c.b16 %v1701, %v1698
        %v1741 = vpack.c.b16 %v1702, %v1699
        %v1742 = vpack.c.b16 %v1703, %v1700
        %v1743 = vpack.c.b16 %v1707, %v1704
        %v1744 = vpack.c.b16 %v1708, %v1705
        %v1745 = vpack.c.b16 %v1709, %v1706
        %v1746 = vpack.c.b16 %v1713, %v1710
        %v1747 = vpack.c.b16 %v1714, %v1711
        %v1748 = vpack.c.b16 %v1715, %v1712
        %v1749 = vpack.c.b16 %v1719, %v1716
        %v1750 = vpack.c.b16 %v1720, %v1717
        %v1751 = vpack.c.b16 %v1721, %v1718
        %v1752 = vpack.c.b16 %v1725, %v1722
        %v1753 = vpack.c.b16 %v1726, %v1723
        %v1754 = vpack.c.b16 %v1727, %v1724
        %v1755 = vpack.c.b16 %v1731, %v1728
        %v1756 = vpack.c.b16 %v1732, %v1729
        %v1757 = vpack.c.b16 %v1733, %v1730
        %1782 = vmatprep.subr.bf16.mxu0 %v1735
        %1783 = vmatpush1.bf16.msra.mxu0 %v1734
        %1784 = vmatprep.subr.bf16.mxu0 %v1738
        %1785 = vmatpush1.bf16.msra.mxu0 %v1737
        %1786 = vmatprep.subr.bf16.mxu0 %v1741
        %1787 = vmatpush1.bf16.msra.mxu0 %v1740
        %1788 = vmatprep.subr.bf16.mxu0 %v1744
        %1789 = vmatpush1.bf16.msra.mxu0 %v1743
        %1790 = vmatprep.subr.bf16.mxu0 %v1747
        %1791 = vmatpush1.bf16.msra.mxu0 %v1746
        %1792 = vmatprep.subr.bf16.mxu0 %v1750
        %1793 = vmatpush1.bf16.msra.mxu0 %v1749
        %1794 = vmatprep.subr.bf16.mxu0 %v1753
        %1795 = vmatpush1.bf16.msra.mxu0 %v1752
        %1796 = vmatprep.subr.bf16.mxu0 %v1756
        %1797 = vmatpush1.bf16.msra.mxu0 %v1755
        %1798 = vmatprep.subr.bf16.mxu0 0
        %1799 = vmatpush1.bf16.msra.mxu0 0
        %1800 = vmatprep.subr.bf16.mxu0 0
        %1801 = vmatpush1.bf16.msra.mxu0 0
        %1802 = vmatprep.subr.bf16.mxu0 0
        %1803 = vmatpush1.bf16.msra.mxu0 0
        %1804 = vmatprep.subr.bf16.mxu0 0
        %1805 = vmatpush1.bf16.msra.mxu0 0
        %1806 = vmatprep.subr.bf16.mxu0 0
        %1807 = vmatpush1.bf16.msra.mxu0 0
        %1808 = vmatprep.subr.bf16.mxu0 0
        %1809 = vmatpush1.bf16.msra.mxu0 0
        %1810 = vmatprep.subr.bf16.mxu0 0
        %1811 = vmatpush1.bf16.msra.mxu0 0
        %1812 = vmatprep.subr.bf16.mxu0 0
        %1813 = vmatpush1.bf16.msra.mxu0 0
        %1814 = vmatprep.mubr.bf16.mxu0 0
        %1815 = vmatmul.mubr.bf16.gmra.mrb[0].mxu0 %v1636
        %v1816 = vpop.f32.mrb[0].mxu0
        %v1817 = vadd.f32 %v1642, %v1816
        %v1818 = vpop.f32.mrb[0].mxu0
        %v1819 = vadd.f32 %v1646, %v1818
        %v1820 = vpop.f32.mrb[0].mxu0
        %v1821 = vadd.f32 %v1642, %v1820
        %v1822 = vpop.f32.mrb[0].mxu0
        %v1823 = vadd.f32 %v1646, %v1822
        %1824 = vdwg.mxu0
        %1825 = vmatprep.subr.bf16.mxu0 0
        %1826 = vmatpush1.bf16.msra.mxu0 %v1736
        %1827 = vmatprep.subr.bf16.mxu0 0
        %1828 = vmatpush1.bf16.msra.mxu0 %v1739
        %1829 = vmatprep.subr.bf16.mxu0 0
        %1830 = vmatpush1.bf16.msra.mxu0 %v1742
        %1831 = vmatprep.subr.bf16.mxu0 0
        %1832 = vmatpush1.bf16.msra.mxu0 %v1745
        %1833 = vmatprep.subr.bf16.mxu0 0
        %1834 = vmatpush1.bf16.msra.mxu0 %v1748
        %1835 = vmatprep.subr.bf16.mxu0 0
        %1836 = vmatpush1.bf16.msra.mxu0 %v1751
        %1837 = vmatprep.subr.bf16.mxu0 0
        %1838 = vmatpush1.bf16.msra.mxu0 %v1754
        %1839 = vmatprep.subr.bf16.mxu0 0
        %1840 = vmatpush1.bf16.msra.mxu0 %v1757
        %1841 = vmatprep.subr.bf16.mxu0 0
        %1842 = vmatpush1.bf16.msra.mxu0 0
        %1843 = vmatprep.subr.bf16.mxu0 0
        %1844 = vmatpush1.bf16.msra.mxu0 0
        %1845 = vmatprep.subr.bf16.mxu0 0
        %1846 = vmatpush1.bf16.msra.mxu0 0
        %1847 = vmatprep.subr.bf16.mxu0 0
        %1848 = vmatpush1.bf16.msra.mxu0 0
        %1849 = vmatprep.subr.bf16.mxu0 0
        %1850 = vmatpush1.bf16.msra.mxu0 0
        %1851 = vmatprep.subr.bf16.mxu0 0
        %1852 = vmatpush1.bf16.msra.mxu0 0
        %1853 = vmatprep.subr.bf16.mxu0 0
        %1854 = vmatpush1.bf16.msra.mxu0 0
        %1855 = vmatprep.subr.bf16.mxu0 0
        %1856 = vmatpush1.bf16.msra.mxu0 0
        %1857 = vmatprep.mubr.bf16.mxu0 0
        %1858 = vmatmul.mubr.bf16.gmra.mrb[0].mxu0 %v1636
        %v1859 = vpop.f32.mrb[0].mxu0
        %v1860 = vadd.f32 %v1650, %v1859
        %v1861 = vpop.f32.mrb[0].mxu0
        %v1862 = vpop.f32.mrb[0].mxu0
        %v1863 = vadd.f32 %v1650, %v1862
        %v1864 = vpop.f32.mrb[0].mxu0
        %1865 = vdwg.mxu0
        %v1866 = vld [vmem:[#allocation11] sm:$0xff]
        %v1867 = vld [vmem:[#allocation11 + $0x8] sm:$0xf]
        %v1868 = vld [vmem:[#allocation11 + $0xc] sm:$0xff]
        %v1869 = vld [vmem:[#allocation11 + $0x14] sm:$0xf]
        %v1870 = vld [vmem:[#allocation11 + $0x18] sm:$0xff]
        %v1871 = vld [vmem:[#allocation11 + $0x20] sm:$0xf]
        %v1872 = vld [vmem:[#allocation11 + $0x24] sm:$0xff]
        %v1873 = vld [vmem:[#allocation11 + $0x2c] sm:$0xf]
        %v1874 = vld [vmem:[#allocation11 + $0x30] sm:$0xff]
        %v1875 = vld [vmem:[#allocation11 + $0x38] sm:$0xf]
        %v1876 = vld [vmem:[#allocation11 + $0x3c] sm:$0xff]
        %v1877 = vld [vmem:[#allocation11 + $0x44] sm:$0xf]
        %v1878 = vld [vmem:[#allocation11 + $0x48] sm:$0xff]
        %v1879 = vld [vmem:[#allocation11 + $0x50] sm:$0xf]
        %v1880 = vld [vmem:[#allocation11 + $0x54] sm:$0xff]
        %v1881 = vld [vmem:[#allocation11 + $0x5c] sm:$0xf]
        %v1882 = vld [vmem:[#allocation11 + $0x60] sm:$0xff]
        %v1883 = vld [vmem:[#allocation11 + $0x68] sm:$0xf]
        %v1884 = vld [vmem:[#allocation11 + $0x6c] sm:$0xff]
        %v1885 = vld [vmem:[#allocation11 + $0x74] sm:$0xf]
        %v1886 = vld [vmem:[#allocation11 + $0x78] sm:$0xff]
        %v1887 = vld [vmem:[#allocation11 + $0x80] sm:$0xf]
        %v1888 = vld [vmem:[#allocation11 + $0x84] sm:$0xff]
        %v1889 = vld [vmem:[#allocation11 + $0x8c] sm:$0xf]
        %v1890 = vld [vmem:[#allocation11 + $0x90] sm:$0xff]
        %v1891 = vld [vmem:[#allocation11 + $0x98] sm:$0xf]
        %v1892 = vld [vmem:[#allocation11 + $0x9c] sm:$0xff]
        %v1893 = vld [vmem:[#allocation11 + $0xa4] sm:$0xf]
        %v1894 = vld [vmem:[#allocation11 + $0xa8] sm:$0xff]
        %v1895 = vld [vmem:[#allocation11 + $0xb0] sm:$0xf]
        %v1896 = vld [vmem:[#allocation11 + $0xb4] sm:$0xff]
        %v1897 = vld [vmem:[#allocation11 + $0xbc] sm:$0xf]
        %v1898 = vld [vmem:[%s16] sm:$0x7]
        %v1900 = vlaneseq
        %v1901 = vshrl.u32 %v1900, 7
        %v1902 = vsub.s32 0, %v1901
        %v1903 = vrot.slane %v1898, %v1902
        %v1904 = vlaneseq
        %v1905 = vshrl.u32 %v1904, 7
        %v1906 = vsub.s32 1, %v1905
        %v1907 = vrot.slane %v1898, %v1906
        %v1908 = vlaneseq
        %v1909 = vshrl.u32 %v1908, 7
        %v1910 = vsub.s32 2, %v1909
        %v1911 = vrot.slane %v1898, %v1910
        %v1947 = vunpack.c.l.b16 %v1866
        %v1948 = vunpack.c.h.b16 %v1866
        %v1949 = vunpack.c.l.b16 %v1867
        %v1950 = vunpack.c.l.b16 %v1868
        %v1951 = vunpack.c.h.b16 %v1868
        %v1952 = vunpack.c.l.b16 %v1869
        %v1953 = vunpack.c.l.b16 %v1870
        %v1954 = vunpack.c.h.b16 %v1870
        %v1955 = vunpack.c.l.b16 %v1871
        %v1956 = vunpack.c.l.b16 %v1872
        %v1957 = vunpack.c.h.b16 %v1872
        %v1958 = vunpack.c.l.b16 %v1873
        %v1959 = vunpack.c.l.b16 %v1874
        %v1960 = vunpack.c.h.b16 %v1874
        %v1961 = vunpack.c.l.b16 %v1875
        %v1962 = vunpack.c.l.b16 %v1876
        %v1963 = vunpack.c.h.b16 %v1876
        %v1964 = vunpack.c.l.b16 %v1877
        %v1965 = vunpack.c.l.b16 %v1878
        %v1966 = vunpack.c.h.b16 %v1878
        %v1967 = vunpack.c.l.b16 %v1879
        %v1968 = vunpack.c.l.b16 %v1880
        %v1969 = vunpack.c.h.b16 %v1880
        %v1970 = vunpack.c.l.b16 %v1881
        %v1971 = vunpack.c.l.b16 %v1882
        %v1972 = vunpack.c.h.b16 %v1882
        %v1973 = vunpack.c.l.b16 %v1883
        %v1974 = vunpack.c.l.b16 %v1884
        %v1975 = vunpack.c.h.b16 %v1884
        %v1976 = vunpack.c.l.b16 %v1885
        %v1977 = vunpack.c.l.b16 %v1886
        %v1978 = vunpack.c.h.b16 %v1886
        %v1979 = vunpack.c.l.b16 %v1887
        %v1980 = vunpack.c.l.b16 %v1888
        %v1981 = vunpack.c.h.b16 %v1888
        %v1982 = vunpack.c.l.b16 %v1889
        %v1983 = vunpack.c.l.b16 %v1890
        %v1984 = vunpack.c.h.b16 %v1890
        %v1985 = vunpack.c.l.b16 %v1891
        %v1986 = vunpack.c.l.b16 %v1892
        %v1987 = vunpack.c.h.b16 %v1892
        %v1988 = vunpack.c.l.b16 %v1893
        %v1989 = vunpack.c.l.b16 %v1894
        %v1990 = vunpack.c.h.b16 %v1894
        %v1991 = vunpack.c.l.b16 %v1895
        %v1992 = vunpack.c.l.b16 %v1896
        %v1993 = vunpack.c.h.b16 %v1896
        %v1994 = vunpack.c.l.b16 %v1897
        %v1995 = vpack.c.b16 %v1950, %v1947
        %v1996 = vpack.c.b16 %v1951, %v1948
        %v1997 = vpack.c.b16 %v1952, %v1949
        %v1998 = vpack.c.b16 %v1956, %v1953
        %v1999 = vpack.c.b16 %v1957, %v1954
        %v2000 = vpack.c.b16 %v1958, %v1955
        %v2001 = vpack.c.b16 %v1962, %v1959
        %v2002 = vpack.c.b16 %v1963, %v1960
        %v2003 = vpack.c.b16 %v1964, %v1961
        %v2004 = vpack.c.b16 %v1968, %v1965
        %v2005 = vpack.c.b16 %v1969, %v1966
        %v2006 = vpack.c.b16 %v1970, %v1967
        %v2007 = vpack.c.b16 %v1974, %v1971
        %v2008 = vpack.c.b16 %v1975, %v1972
        %v2009 = vpack.c.b16 %v1976, %v1973
        %v2010 = vpack.c.b16 %v1980, %v1977
        %v2011 = vpack.c.b16 %v1981, %v1978
        %v2012 = vpack.c.b16 %v1982, %v1979
        %v2013 = vpack.c.b16 %v1986, %v1983
        %v2014 = vpack.c.b16 %v1987, %v1984
        %v2015 = vpack.c.b16 %v1988, %v1985
        %v2016 = vpack.c.b16 %v1992, %v1989
        %v2017 = vpack.c.b16 %v1993, %v1990
        %v2018 = vpack.c.b16 %v1994, %v1991
        %2043 = vmatprep.subr.bf16.mxu0 %v1996
        %2044 = vmatpush1.bf16.msra.mxu0 %v1995
        %2045 = vmatprep.subr.bf16.mxu0 %v1999
        %2046 = vmatpush1.bf16.msra.mxu0 %v1998
        %2047 = vmatprep.subr.bf16.mxu0 %v2002
        %2048 = vmatpush1.bf16.msra.mxu0 %v2001
        %2049 = vmatprep.subr.bf16.mxu0 %v2005
        %2050 = vmatpush1.bf16.msra.mxu0 %v2004
        %2051 = vmatprep.subr.bf16.mxu0 %v2008
        %2052 = vmatpush1.bf16.msra.mxu0 %v2007
        %2053 = vmatprep.subr.bf16.mxu0 %v2011
        %2054 = vmatpush1.bf16.msra.mxu0 %v2010
        %2055 = vmatprep.subr.bf16.mxu0 %v2014
        %2056 = vmatpush1.bf16.msra.mxu0 %v2013
        %2057 = vmatprep.subr.bf16.mxu0 %v2017
        %2058 = vmatpush1.bf16.msra.mxu0 %v2016
        %2059 = vmatprep.subr.bf16.mxu0 0
        %2060 = vmatpush1.bf16.msra.mxu0 0
        %2061 = vmatprep.subr.bf16.mxu0 0
        %2062 = vmatpush1.bf16.msra.mxu0 0
        %2063 = vmatprep.subr.bf16.mxu0 0
        %2064 = vmatpush1.bf16.msra.mxu0 0
        %2065 = vmatprep.subr.bf16.mxu0 0
        %2066 = vmatpush1.bf16.msra.mxu0 0
        %2067 = vmatprep.subr.bf16.mxu0 0
        %2068 = vmatpush1.bf16.msra.mxu0 0
        %2069 = vmatprep.subr.bf16.mxu0 0
        %2070 = vmatpush1.bf16.msra.mxu0 0
        %2071 = vmatprep.subr.bf16.mxu0 0
        %2072 = vmatpush1.bf16.msra.mxu0 0
        %2073 = vmatprep.subr.bf16.mxu0 0
        %2074 = vmatpush1.bf16.msra.mxu0 0
        %2075 = vmatprep.mubr.bf16.mxu0 0
        %2076 = vmatmul.mubr.bf16.gmra.mrb[0].mxu0 %v707
        %v2077 = vpop.f32.mrb[0].mxu0
        %v2078 = vadd.f32 %v1903, %v2077
        %v2079 = vpop.f32.mrb[0].mxu0
        %v2080 = vadd.f32 %v1907, %v2079
        %v2081 = vpop.f32.mrb[0].mxu0
        %v2082 = vadd.f32 %v1903, %v2081
        %v2083 = vpop.f32.mrb[0].mxu0
        %v2084 = vadd.f32 %v1907, %v2083
        %2085 = vdwg.mxu0
        %2086 = vmatprep.subr.bf16.mxu0 0
        %2087 = vmatpush1.bf16.msra.mxu0 %v1997
        %2088 = vmatprep.subr.bf16.mxu0 0
        %2089 = vmatpush1.bf16.msra.mxu0 %v2000
        %2090 = vmatprep.subr.bf16.mxu0 0
        %2091 = vmatpush1.bf16.msra.mxu0 %v2003
        %2092 = vmatprep.subr.bf16.mxu0 0
        %2093 = vmatpush1.bf16.msra.mxu0 %v2006
        %2094 = vmatprep.subr.bf16.mxu0 0
        %2095 = vmatpush1.bf16.msra.mxu0 %v2009
        %2096 = vmatprep.subr.bf16.mxu0 0
        %2097 = vmatpush1.bf16.msra.mxu0 %v2012
        %2098 = vmatprep.subr.bf16.mxu0 0
        %2099 = vmatpush1.bf16.msra.mxu0 %v2015
        %2100 = vmatprep.subr.bf16.mxu0 0
        %2101 = vmatpush1.bf16.msra.mxu0 %v2018
        %2102 = vmatprep.subr.bf16.mxu0 0
        %2103 = vmatpush1.bf16.msra.mxu0 0
        %2104 = vmatprep.subr.bf16.mxu0 0
        %2105 = vmatpush1.bf16.msra.mxu0 0
        %2106 = vmatprep.subr.bf16.mxu0 0
        %2107 = vmatpush1.bf16.msra.mxu0 0
        %2108 = vmatprep.subr.bf16.mxu0 0
        %2109 = vmatpush1.bf16.msra.mxu0 0
        %2110 = vmatprep.subr.bf16.mxu0 0
        %2111 = vmatpush1.bf16.msra.mxu0 0
        %2112 = vmatprep.subr.bf16.mxu0 0
        %2113 = vmatpush1.bf16.msra.mxu0 0
        %2114 = vmatprep.subr.bf16.mxu0 0
        %2115 = vmatpush1.bf16.msra.mxu0 0
        %2116 = vmatprep.subr.bf16.mxu0 0
        %2117 = vmatpush1.bf16.msra.mxu0 0
        %2118 = vmatprep.mubr.bf16.mxu0 0
        %2119 = vmatmul.mubr.bf16.gmra.mrb[0].mxu0 %v707
        %v2120 = vpop.f32.mrb[0].mxu0
        %v2121 = vadd.f32 %v1911, %v2120
        %v2122 = vpop.f32.mrb[0].mxu0
        %v2123 = vpop.f32.mrb[0].mxu0
        %v2124 = vadd.f32 %v1911, %v2123
        %v2125 = vpop.f32.mrb[0].mxu0
        %2126 = vdwg.mxu0
        %v2127 = vadd.f32 %v1817, %v2078
        %v2128 = vadd.f32 %v1821, %v2082
        %v2129 = vxor.u32 %v2127, 2147483648
        %v2130 = vxor.u32 %v2128, 2147483648
        %v2131 = vmul.f32 %v2129, 1.442695
        %v2132 = vpow.pop %v2131
        %v2133 = vmul.f32 %v2130, 1.442695
        %v2134 = vpow.pop %v2133
        %v2135 = vadd.f32 %v2132, 1.0
        %v2136 = vadd.f32 %v2134, 1.0
        %v2137 = vrcp.pop %v2135
        %v2138 = vmul.f32 1.0, %v2137
        %v2139 = vrcp.pop %v2136
        %v2140 = vmul.f32 1.0, %v2139
        %v2141 = vadd.f32 %v1819, %v2080
        %v2142 = vadd.f32 %v1823, %v2084
        %v2143 = vxor.u32 %v2141, 2147483648
        %v2144 = vxor.u32 %v2142, 2147483648
        %v2145 = vmul.f32 %v2143, 1.442695
        %v2146 = vpow.pop %v2145
        %v2147 = vmul.f32 %v2144, 1.442695
        %v2148 = vpow.pop %v2147
        %v2149 = vadd.f32 %v2146, 1.0
        %v2150 = vadd.f32 %v2148, 1.0
        %v2151 = vrcp.pop %v2149
        %v2152 = vmul.f32 1.0, %v2151
        %v2153 = vrcp.pop %v2150
        %v2154 = vmul.f32 1.0, %v2153
        %v2155 = vmul.f32 %v2138, %v2121
        %v2156 = vmul.f32 %v2140, %v2124
        %v2157 = vadd.f32 %v1860, %v2155
        %v2158 = vadd.f32 %v1863, %v2156
        %v2159 = vtanh.pop %v2157
        %v2160 = vtanh.pop %v2158
        %v2161 = vsub.f32 1.0, %v2152
        %v2162 = vsub.f32 1.0, %v2154
        %v2163 = vmul.f32 %v2161, %v2159
        %v2164 = vmul.f32 %v2162, %v2160
        %v2165 = vmul.f32 %v2152, %v705
        %v2166 = vmul.f32 %v2154, %v706
        %v2167 = vadd.f32 %v2163, %v2165
        %v2168 = vadd.f32 %v2164, %v2166
        %2169 = vst [vmem:[%s678] sm:$0xff] %v2167
        %2170 = vst [vmem:[%s678 + $0x8] sm:$0xff] %v2168
        %s2171 = sand.u32 %s420, 1
        %s2172 = scalar_lea.sflag [#allocation4], %s2171
        %s2173 = sand.u32 %s420, 1
        %s2174 = smul.addr %s2173, 16
        %s2175 = scalar_lea.vmem [#allocation13], %s2174
        // Predicated region
        $region113: #{tpu_custom_call.1} parent=87 // pred_check
          %p2176 = pneg %p430
        $region114: #{tpu_custom_call.1} parent=87 // pred_check_branch
          %2178 = sbr.rel (%p2176) target = $region116
        $region115: #{tpu_custom_call.1} parent=87 // pred_region
          %s2179 = smul.u32 2, %s35
          %s2181 = ssub.s32 256, 256
          %2182 = vsyncadd %s2172, %s2181
          %s2183 = smul.addr %s2179, 128
          %s2184 = scalar_lea.hbm %s17, %s2183
          %s2185 = sshll.u32 %s2175, 4
          %s2186 = int_to_ptr.vmem [resolvable:$true] %s2185
          %2191 = dma.vmem_to_hbm [thread:$0]  %s2186, 256, %s2184, %s2172, 128, 128, 8
        $region116: #{tpu_custom_call.1} parent=87 // pred_fallthru
          _
      $region88: #{tpu_custom_call.1} parent=5 // pred_fallthru
        _
      %p2192 = scmp.le.s32.totalorder 2, %s30
      // Predicated region
      $region117: #{tpu_custom_call.1} parent=5 // pred_check
        %p2193 = pneg %p2192
      $region118: #{tpu_custom_call.1} parent=5 // pred_check_branch
        %2195 = sbr.rel (%p2193) target = $region120
      $region119: #{tpu_custom_call.1} parent=5 // pred_region
        %s2196 = ssub.s32 %s30, 2
        // Predicated region
        $region121: #{tpu_custom_call.1} parent=119 // pred_check
          %p2197 = pneg %p436
        $region122: #{tpu_custom_call.1} parent=119 // pred_check_branch
          %2199 = sbr.rel (%p2197) target = $region124
        $region123: #{tpu_custom_call.1} parent=119 // pred_region
          %s2200 = sand.u32 %s421, 1
          %s2201 = scalar_lea.sflag [#allocation4], %s2200
          %s2202 = sand.u32 %s421, 1
          %s2203 = smul.addr %s2202, 16
          %s2204 = scalar_lea.vmem [#allocation13], %s2203
          %2205 = dma.done %s2201, 256
        $region124: #{tpu_custom_call.1} parent=119 // pred_fallthru
          _
      $region120: #{tpu_custom_call.1} parent=5 // pred_fallthru
        _
    $region6: #{tpu_custom_call.1} parent=1 // loop_footer
      %s34 = sadd.s32 1, %s30
    $region7: #{tpu_custom_call.1} parent=1 // loop_footer_branch
      %29 = sbr.rel target = $region3
    $region8: #{tpu_custom_call.1} parent=1 // loop_exit
      _
    %2206 = vsyncpa [#allocation3], 1
    %s2207 = scalar_lea.sflag [#allocation3], 1
    %2208 = vsyncpa %s2207, 1
    %2209 = vsyncpa [#allocation6], 1
    %2210 = vsyncpa [#allocation9], 1
    %2211 = vsyncpa [#allocation12], 1
    %2212 = vsyncpa [#allocation4], 1
    %s2213 = scalar_lea.sflag [#allocation4], 1
    %2214 = vsyncpa %s2213, 1

</llo_original>
